<compile_context>
chip_gen: v7x
topology: tpu7x:2x2x1
jax: 0.10.0
libtpu: 0.0.40
codegen_flags: <defaults>
</compile_context>

<pallas_src>
import math
import functools

import jax
import jax.numpy as jnp
import numpy as np
from jax.experimental import pallas as pl
from jax.experimental.pallas import tpu as pltpu


# ---------------------------------------------------------------------------
# Kernel
# ---------------------------------------------------------------------------
def cross_attention_kernel(q_ref, k_ref, v_ref,
                           wq_ref, bq_ref,
                           wk_ref, bk_ref,
                           wv_ref, bv_ref,
                           wo_ref, bo_ref,
                           out_ref,
                           acc_ref,
                           *, batch_block, seq_q, seq_k,
                           heads_per_group, head_dim, approx_recip):
    """Grid = (batch_blocks, head_groups).

    q_ref : (Bt*Sq, Dq)            k_ref/v_ref : (Bt*Sk, Dk/Dv)
    wq/wk/wv_ref : (Din, LB) slice of the projection for this head group
    wo_ref : (LB, H) slice of the output projection, b*_ref : (1, LB)/(1, H) f32
    out_ref : (Bt*Sq, H)           acc_ref : (Bt*Sq, H) f32 accumulator scratch
    where LB = heads_per_group * head_dim (a multiple of 128, or == H).
    """
    g = pl.program_id(1)
    lane_block = heads_per_group * head_dim
    rows_q = batch_block * seq_q
    cd = wq_ref.dtype                       # compute dtype (bf16 by default)

    @pl.when(g == 0)
    def _init():
        acc_ref[...] = jnp.zeros_like(acc_ref)

    # ---- Q/K/V projections for this head group: tall MXU matmuls, f32 acc.
    # (the 1/sqrt(head_dim) scale is pre-folded into wq/bq by the wrapper)
    q = jnp.dot(q_ref[...], wq_ref[...],
                preferred_element_type=jnp.float32) + bq_ref[...]
    k = jnp.dot(k_ref[...], wk_ref[...],
                preferred_element_type=jnp.float32) + bk_ref[...]
    v = jnp.dot(v_ref[...], wv_ref[...],
                preferred_element_type=jnp.float32) + bv_ref[...]

    q3 = q.reshape(batch_block, seq_q, lane_block).astype(cd)
    k3 = k.reshape(batch_block, seq_k, lane_block).astype(cd)
    v3 = v.reshape(batch_block, seq_k, lane_block).astype(cd)

    # ---- per-head attention within the group (bounded unroll), batched over
    # the batch block.  Contract on head_dim directly -- no explicit K.T.
    # TODO(synk): KV-tiled online-softmax (flash) for very large Sk.
    for hl in range(heads_per_group):
        lo = hl * head_dim
        hi = lo + head_dim
        qh = q3[:, :, lo:hi]                 # (Bt, Sq, hd)
        kh = k3[:, :, lo:hi]                 # (Bt, Sk, hd)
        vh = v3[:, :, lo:hi]                 # (Bt, Sk, hd)

        scores = jnp.einsum('bqd,bkd->bqk', qh, kh,
                            preferred_element_type=jnp.float32)   # (Bt,Sq,Sk)

        # Softmax in f32 (max-subtracted).
        m = jnp.max(scores, axis=-1, keepdims=True)
        p = jnp.exp(scores - m)
        denom = jnp.sum(p, axis=-1, keepdims=True)
        if approx_recip:
            w = p * pl.reciprocal(denom, approx=True)   # EUP path (bf16 mode)
        else:
            w = p / denom                               # exact (f32 parity)
        # TODO(synk): attention dropout omitted (eval-mode identity).

        head_out = jnp.einsum('bqk,bkd->bqd', w.astype(cd), vh,
                              preferred_element_type=jnp.float32)  # (Bt,Sq,hd)

        # Lane-dense accumulation: fold the head straight through its slice of
        # the output projection so every store is a full-width (rows, H) f32
        # accumulate (no masked sub-128-lane writes, no head concat).
        wo_h = wo_ref[lo:hi, :]              # (hd, H) static sublane slice
        acc_ref[...] += jnp.dot(
            head_out.reshape(rows_q, head_dim).astype(cd), wo_h,
            preferred_element_type=jnp.float32)

    @pl.when(g == pl.num_programs(1) - 1)
    def _finalize():
        out_ref[...] = (acc_ref[...] + bo_ref[...]).astype(out_ref.dtype)


# ---------------------------------------------------------------------------
# Tiling / resource heuristics
# ---------------------------------------------------------------------------
def _heads_per_group(num_heads, head_dim):
    """Smallest divisor of num_heads whose lane span is a multiple of 128
    (keeps weight BlockSpecs lane-aligned); falls back to all heads (lane span
    == hidden, i.e. the full last dim)."""
    for g in range(1, num_heads):
        if num_heads % g == 0 and (g * head_dim) % 128 == 0:
            return g
    return num_heads


def _vmem_budget_bytes(frac=0.75):
    """~75% of this generation's VMEM (v7x: 64 MiB/TC fallback if unknown)."""
    try:
        cap = pltpu.get_tpu_info().vmem_capacity_bytes
    except Exception:
        cap = 64 << 20
    return int(cap * frac)


def _step_vmem_bytes(bt, seq_q, seq_k, dq, dk, dv, hidden, lane_block, head_dim,
                     in_bytes, w_bytes, out_bytes, n_groups):
    """Per-grid-step VMEM estimate: double-buffered streamed activation tiles,
    (single-buffered when resident) weight-group slices, f32 accumulator
    scratch, and the transient projection / score buffers."""
    rows_q, rows_k = bt * seq_q, bt * seq_k
    wbuf = 1 if n_groups == 1 else 2
    act = 2 * in_bytes * (rows_q * dq + rows_k * (dk + dv))
    out = 2 * out_bytes * rows_q * hidden
    wts = wbuf * (w_bytes * (dq + dk + dv + hidden) * lane_block
                  + 4 * (3 * lane_block + hidden))
    acc = 4 * rows_q * hidden
    tmp = ((4 + in_bytes) * lane_block * (rows_q + 2 * rows_k)   # projections
           + 3 * 4 * rows_q * seq_k                              # scores/p/w f32
           + 4 * rows_q * head_dim)                              # head_out f32
    return act + out + wts + acc + tmp


def _pick_batch_block(B, seq_q, seq_k, dq, dk, dv, hidden, lane_block, head_dim,
                      in_bytes, w_bytes, out_bytes, n_groups, *,
                      vmem_budget, target_rows=512):
    def aligned(bt):
        # (8,128) BlockSpec rule: second-to-last block dim must be a multiple
        # of 8 or span the full array dim.
        rq = (bt * seq_q) % 8 == 0 or bt == B
        rk = (bt * seq_k) % 8 == 0 or bt == B
        return rq and rk

    def fits(bt):
        return _step_vmem_bytes(bt, seq_q, seq_k, dq, dk, dv, hidden,
                                lane_block, head_dim, in_bytes, w_bytes,
                                out_bytes, n_groups) <= vmem_budget

    divisors = [d for d in range(1, B + 1) if B % d == 0]
    candidates = [d for d in divisors if aligned(d) and fits(d)]
    if not candidates:
        # Nothing fits the budget (huge Sk / hidden): smallest aligned block;
        # vmem_limit_bytes arbitrates at compile time.
        # TODO(synk): flash path is the real fix for this regime.
        return min(d for d in divisors if aligned(d))

    # Smallest block reaching the row target (>=512 rows/step amortizes the
    # ~0.35us step overhead and fills the 256-deep v6e/v7x MXU), else the
    # largest block that fits.
    meeting = [d for d in candidates if d * seq_q >= target_rows]
    bt = min(meeting) if meeting else max(candidates)

    # v7x megacore: keep >= 2 batch blocks so the 'parallel' axis can be
    # sharded across the two TensorCores.
    if B // bt < 2:
        alts = [d for d in candidates if B // d >= 2]
        if alts:
            bt = max(alts)
    return bt


# ---------------------------------------------------------------------------
# Wrapper
# ---------------------------------------------------------------------------
def cross_attention(query, key, value, params, *, num_heads,
                    batch_block=None, compute_dtype=jnp.bfloat16,
                    target_rows=512):
    """query: (B, Sq, Dq), key/value: (B, Sk, Dk/Dv) -> (B, Sq, H).

    Matches the PyTorch module in eval mode (dropout disabled).  If Sq == 1 the
    output is squeezed to (B, H), mirroring the module's final squeeze.
    compute_dtype=bf16 (default) runs the MXU matmuls in bf16 with f32
    accumulation; compute_dtype=float32 gives module-faithful numerics
    (including an exact softmax division).
    """
    B, Sq, Dq = query.shape
    Bk, Sk, Dk = key.shape
    Bv, Skv, Dv = value.shape
    assert B == Bk == Bv and Sk == Skv
    wq, bq, wk, bk, wv, bv, wo, bo = params
    H = wq.shape[1]
    assert H % num_heads == 0
    head_dim = H // num_heads

    hpg = _heads_per_group(num_heads, head_dim)
    lane_block = hpg * head_dim
    n_groups = H // lane_block

    in_bytes = jnp.dtype(compute_dtype).itemsize
    w_bytes = in_bytes
    out_bytes = jnp.dtype(query.dtype).itemsize
    vmem_budget = _vmem_budget_bytes()

    if batch_block is None:
        batch_block = _pick_batch_block(
            B, Sq, Sk, Dq, Dk, Dv, H, lane_block, head_dim,
            in_bytes, w_bytes, out_bytes, n_groups,
            vmem_budget=vmem_budget, target_rows=target_rows)
    assert B % batch_block == 0
    assert (batch_block * Sq) % 8 == 0 or batch_block == B
    assert (batch_block * Sk) % 8 == 0 or batch_block == B
    nb = B // batch_block

    # One-time parameter prep: fold the softmax scale into wq/bq, cast weights
    # and activations to the compute dtype (bf16 halves DMA bytes + resident
    # VMEM), keep biases f32 (added after f32 accumulation).
    scale = 1.0 / math.sqrt(head_dim)
    f32 = jnp.float32
    wq_c = (wq.astype(f32) * scale).astype(compute_dtype)
    bq_c = (bq.astype(f32) * scale).reshape(1, H)
    wk_c = wk.astype(compute_dtype)
    bk_c = bk.astype(f32).reshape(1, H)
    wv_c = wv.astype(compute_dtype)
    bv_c = bv.astype(f32).reshape(1, H)
    wo_c = wo.astype(compute_dtype)
    bo_c = bo.astype(f32).reshape(1, H)

    q2 = query.reshape(B * Sq, Dq).astype(compute_dtype)
    k2 = key.reshape(B * Sk, Dk).astype(compute_dtype)
    v2 = value.reshape(B * Sk, Dv).astype(compute_dtype)

    approx_recip = jnp.dtype(compute_dtype) != jnp.dtype(jnp.float32)

    kernel = functools.partial(
        cross_attention_kernel,
        batch_block=batch_block, seq_q=Sq, seq_k=Sk,
        heads_per_group=hpg, head_dim=head_dim, approx_recip=approx_recip)

    # Single-buffer blocks whose index never changes over the grid
    # (double-buffering a resident block just doubles its VMEM).
    const_w = n_groups == 1
    const_act = nb == 1

    def spec(shape, index_map, constant):
        if constant:
            return pl.BlockSpec(shape, index_map, pipeline_mode=pl.Buffered(1))
        return pl.BlockSpec(shape, index_map)

    in_specs = [
        spec((batch_block * Sq, Dq), lambda b, g: (b, 0), const_act),
        spec((batch_block * Sk, Dk), lambda b, g: (b, 0), const_act),
        spec((batch_block * Sk, Dv), lambda b, g: (b, 0), const_act),
        spec((Dq, lane_block), lambda b, g: (0, g), const_w),
        spec((1, lane_block), lambda b, g: (0, g), const_w),
        spec((Dk, lane_block), lambda b, g: (0, g), const_w),
        spec((1, lane_block), lambda b, g: (0, g), const_w),
        spec((Dv, lane_block), lambda b, g: (0, g), const_w),
        spec((1, lane_block), lambda b, g: (0, g), const_w),
        spec((lane_block, H), lambda b, g: (g, 0), const_w),
        spec((1, H), lambda b, g: (0, 0), True),
    ]

    out2 = pl.pallas_call(
        kernel,
        out_shape=jax.ShapeDtypeStruct((B * Sq, H), query.dtype),
        grid_spec=pltpu.PrefetchScalarGridSpec(
            num_scalar_prefetch=0,
            grid=(nb, n_groups),
            in_specs=in_specs,
            out_specs=pl.BlockSpec((batch_block * Sq, H), lambda b, g: (b, 0)),
            scratch_shapes=[pltpu.VMEM((batch_block * Sq, H), jnp.float32)],
        ),
        compiler_params=pltpu.CompilerParams(
            dimension_semantics=("parallel", "arbitrary"),
            vmem_limit_bytes=vmem_budget),
    )(q2, k2, v2, wq_c, bq_c, wk_c, bk_c, wv_c, bv_c, wo_c, bo_c)

    out = out2.reshape(B, Sq, H)
    if Sq == 1:
        out = out[:, 0, :]
    return out


# ---------------------------------------------------------------------------
# Pure-JAX reference (eval-mode PyTorch forward) + parameter init
# ---------------------------------------------------------------------------
def reference_cross_attention(query, key, value, params, *, num_heads):
    wq, bq, wk, bk, wv, bv, wo, bo = params
    B, Sq, _ = query.shape
    H = wq.shape[1]
    hd = H // num_heads

    def proj(x, w, b):
        return jnp.einsum("bsd,dh->bsh", x, w) + b

    q = proj(query, wq, bq).reshape(B, Sq, num_heads, hd).transpose(0, 2, 1, 3)
    k = proj(key, wk, bk).reshape(B, -1, num_heads, hd).transpose(0, 2, 1, 3)
    v = proj(value, wv, bv).reshape(B, -1, num_heads, hd).transpose(0, 2, 1, 3)

    scores = jnp.einsum("bhqd,bhkd->bhqk", q, k) / math.sqrt(hd)
    weights = jax.nn.softmax(scores, axis=-1)
    attended = jnp.einsum("bhqk,bhkd->bhqd", weights, v)
    attended = attended.transpose(0, 2, 1, 3).reshape(B, Sq, H)
    out = jnp.einsum("bsh,hg->bsg", attended, wo) + bo
    if Sq == 1:
        out = out[:, 0, :]
    return out


def init_params(key, query_dim, key_dim, value_dim, hidden_dim):
    """Weights stored as (in, out) so the kernel computes x @ W + b."""
    keys = jax.random.split(key, 8)

    def linear(kw, kb, din, dout):
        bound = 1.0 / math.sqrt(din)
        w = jax.random.uniform(kw, (din, dout), jnp.float32, -bound, bound)
        b = jax.random.uniform(kb, (1, dout), jnp.float32, -bound, bound)
        return w, b

    wq, bq = linear(keys[0], keys[1], query_dim, hidden_dim)
    wk, bk = linear(keys[2], keys[3], key_dim, hidden_dim)
    wv, bv = linear(keys[4], keys[5], value_dim, hidden_dim)
    wo, bo = linear(keys[6], keys[7], hidden_dim, hidden_dim)
    return (wq, bq, wk, bk, wv, bv, wo, bo)


# ---------------------------------------------------------------------------
# Self-test
# ---------------------------------------------------------------------------
if __name__ == "__main__":

    def run_case(case_key, B, Sq, Sk, qd, kd, vd, H, heads):
        kq, kk, kv, kp = jax.random.split(case_key, 4)
        query = jax.random.normal(kq, (B, Sq, qd), jnp.float32)
        key = jax.random.normal(kk, (B, Sk, kd), jnp.float32)
        value = jax.random.normal(kv, (B, Sk, vd), jnp.float32)
        params = init_params(kp, qd, kd, vd, H)
        ref = reference_cross_attention(query, key, value, params,
                                        num_heads=heads)

        # f32 path: module-faithful numerics (exact softmax division).
        out_f32 = jax.block_until_ready(
            cross_attention(query, key, value, params, num_heads=heads,
                            compute_dtype=jnp.float32))
        np.testing.assert_allclose(np.asarray(out_f32), np.asarray(ref),
                                   atol=5e-4, rtol=5e-4)

        # Default bf16 MXU path (f32 accumulation + f32 softmax).
        out_bf16 = jax.block_until_ready(
            cross_attention(query, key, value, params, num_heads=heads))
        np.testing.assert_allclose(np.asarray(out_bf16), np.asarray(ref),
                                   atol=5e-2, rtol=5e-2)

    case_keys = jax.random.split(jax.random.PRNGKey(0), 3)

    # Small module-consistent shapes (single head group, two batch blocks).
    run_case(case_keys[0], B=2, Sq=8, Sk=8, qd=16, kd=24, vd=24, H=32, heads=4)
    # Multiple 128-lane head groups (head_dim=64) + multi batch-block grid.
    run_case(case_keys[1], B=4, Sq=8, Sk=16, qd=32, kd=48, vd=48, H=256, heads=4)
    # Single-query (Sq == 1) path exercising the module's final squeeze.
    run_case(case_keys[2], B=2, Sq=1, Sk=8, qd=16, kd=24, vd=24, H=32, heads=4)

    print("KERNEL_OK")
</pallas_src>

<mosaic_0001>
module attributes {stable_mosaic.version = 11 : i64} {
  func.func @cross_attention_kernel(%arg0: i32, %arg1: i32, %arg2: memref<8x16xf32, #tpu.memory_space<vmem>>, %arg3: memref<8x24xf32, #tpu.memory_space<vmem>>, %arg4: memref<8x24xf32, #tpu.memory_space<vmem>>, %arg5: memref<16x32xf32, #tpu.memory_space<vmem>>, %arg6: memref<1x32xf32, #tpu.memory_space<vmem>>, %arg7: memref<24x32xf32, #tpu.memory_space<vmem>>, %arg8: memref<1x32xf32, #tpu.memory_space<vmem>>, %arg9: memref<24x32xf32, #tpu.memory_space<vmem>>, %arg10: memref<1x32xf32, #tpu.memory_space<vmem>>, %arg11: memref<32x32xf32, #tpu.memory_space<vmem>>, %arg12: memref<1x32xf32, #tpu.memory_space<vmem>>, %arg13: memref<8x32xf32, #tpu.memory_space<vmem>>, %arg14: memref<8x32xf32, #tpu.memory_space<vmem>>) attributes {dimension_semantics = [#tpu.dimension_semantics<parallel>, #tpu.dimension_semantics<arbitrary>], iteration_bounds = array<i64: 2, 1>, scalar_prefetch = 0 : i64, scratch_operands = 1 : i64, tpu.core_type = #tpu.core_type<tc>, window_params = [{transform_indices = @transform_0, window_bounds = array<i64: 8, 16>}, {transform_indices = @transform_1, window_bounds = array<i64: 8, 24>}, {transform_indices = @transform_2, window_bounds = array<i64: 8, 24>}, {pipeline_mode = #tpu.pipeline_mode<synchronous>, transform_indices = @transform_3, window_bounds = array<i64: 16, 32>}, {pipeline_mode = #tpu.pipeline_mode<synchronous>, transform_indices = @transform_4, window_bounds = array<i64: 1, 32>}, {pipeline_mode = #tpu.pipeline_mode<synchronous>, transform_indices = @transform_5, window_bounds = array<i64: 24, 32>}, {pipeline_mode = #tpu.pipeline_mode<synchronous>, transform_indices = @transform_6, window_bounds = array<i64: 1, 32>}, {pipeline_mode = #tpu.pipeline_mode<synchronous>, transform_indices = @transform_7, window_bounds = array<i64: 24, 32>}, {pipeline_mode = #tpu.pipeline_mode<synchronous>, transform_indices = @transform_8, window_bounds = array<i64: 1, 32>}, {pipeline_mode = #tpu.pipeline_mode<synchronous>, transform_indices = @transform_9, window_bounds = array<i64: 32, 32>}, {pipeline_mode = #tpu.pipeline_mode<synchronous>, transform_indices = @transform_10, window_bounds = array<i64: 1, 32>}, {transform_indices = @transform_11, window_bounds = array<i64: 8, 32>}]} {
    %c0_i32 = arith.constant 0 : i32
    %0 = arith.cmpi eq, %arg1, %c0_i32 : i32
    %1 = arith.extui %0 : i1 to i32
    %c0_i32_0 = arith.constant 0 : i32
    %2 = arith.cmpi ne, %1, %c0_i32_0 : i32
    scf.if %2 {
      %cst_63 = arith.constant 0.000000e+00 : f32
      %107 = vector.broadcast %cst_63 : f32 to vector<8x32xf32>
      %c0_64 = arith.constant 0 : index
      %c0_65 = arith.constant 0 : index
      %108 = vector.load %arg14[%c0_64, %c0_65] : memref<8x32xf32, #tpu.memory_space<vmem>>, vector<8x32xf32>
      tpu.vector_store %arg14[%c0_64, %c0_65], %107 {strides = array<i32>} : memref<8x32xf32, #tpu.memory_space<vmem>>, vector<8x32xf32>,
    } else {
    }
    %c0 = arith.constant 0 : index
    %c0_1 = arith.constant 0 : index
    %3 = vector.load %arg2[%c0, %c0_1] : memref<8x16xf32, #tpu.memory_space<vmem>>, vector<8x16xf32>
    %c0_2 = arith.constant 0 : index
    %c0_3 = arith.constant 0 : index
    %4 = vector.load %arg5[%c0_2, %c0_3] : memref<16x32xf32, #tpu.memory_space<vmem>>, vector<16x32xf32>
    %cst = arith.constant dense<0.000000e+00> : vector<8x32xf32>
    %5 = tpu.matmul %3, %4, %cst {dimension_numbers = #tpu.dot_dimension_numbers<[1], [0], [0], [1], [0, 0, 1, 1], [], []>} : vector<8x16xf32>, vector<16x32xf32>, vector<8x32xf32> -> vector<8x32xf32>
    %c0_4 = arith.constant 0 : index
    %c0_5 = arith.constant 0 : index
    %6 = vector.load %arg6[%c0_4, %c0_5] : memref<1x32xf32, #tpu.memory_space<vmem>>, vector<1x32xf32>
    %7 = vector.broadcast %6 : vector<1x32xf32> to vector<8x32xf32>
    %8 = arith.addf %5, %7 : vector<8x32xf32>
    %c0_6 = arith.constant 0 : index
    %c0_7 = arith.constant 0 : index
    %9 = vector.load %arg3[%c0_6, %c0_7] : memref<8x24xf32, #tpu.memory_space<vmem>>, vector<8x24xf32>
    %c0_8 = arith.constant 0 : index
    %c0_9 = arith.constant 0 : index
    %10 = vector.load %arg7[%c0_8, %c0_9] : memref<24x32xf32, #tpu.memory_space<vmem>>, vector<24x32xf32>
    %cst_10 = arith.constant dense<0.000000e+00> : vector<8x32xf32>
    %11 = tpu.matmul %9, %10, %cst_10 {dimension_numbers = #tpu.dot_dimension_numbers<[1], [0], [0], [1], [0, 0, 1, 1], [], []>} : vector<8x24xf32>, vector<24x32xf32>, vector<8x32xf32> -> vector<8x32xf32>
    %c0_11 = arith.constant 0 : index
    %c0_12 = arith.constant 0 : index
    %12 = vector.load %arg8[%c0_11, %c0_12] : memref<1x32xf32, #tpu.memory_space<vmem>>, vector<1x32xf32>
    %13 = vector.broadcast %12 : vector<1x32xf32> to vector<8x32xf32>
    %14 = arith.addf %11, %13 : vector<8x32xf32>
    %c0_13 = arith.constant 0 : index
    %c0_14 = arith.constant 0 : index
    %15 = vector.load %arg4[%c0_13, %c0_14] : memref<8x24xf32, #tpu.memory_space<vmem>>, vector<8x24xf32>
    %c0_15 = arith.constant 0 : index
    %c0_16 = arith.constant 0 : index
    %16 = vector.load %arg9[%c0_15, %c0_16] : memref<24x32xf32, #tpu.memory_space<vmem>>, vector<24x32xf32>
    %cst_17 = arith.constant dense<0.000000e+00> : vector<8x32xf32>
    %17 = tpu.matmul %15, %16, %cst_17 {dimension_numbers = #tpu.dot_dimension_numbers<[1], [0], [0], [1], [0, 0, 1, 1], [], []>} : vector<8x24xf32>, vector<24x32xf32>, vector<8x32xf32> -> vector<8x32xf32>
    %c0_18 = arith.constant 0 : index
    %c0_19 = arith.constant 0 : index
    %18 = vector.load %arg10[%c0_18, %c0_19] : memref<1x32xf32, #tpu.memory_space<vmem>>, vector<1x32xf32>
    %19 = vector.broadcast %18 : vector<1x32xf32> to vector<8x32xf32>
    %20 = arith.addf %17, %19 : vector<8x32xf32>
    %21 = vector.shape_cast %8 : vector<8x32xf32> to vector<1x8x32xf32>
    %22 = vector.shape_cast %14 : vector<8x32xf32> to vector<1x8x32xf32>
    %23 = vector.shape_cast %20 : vector<8x32xf32> to vector<1x8x32xf32>
    %24 = vector.extract_strided_slice %21 {offsets = [0, 0, 0], sizes = [1, 8, 8], strides = [1, 1, 1]} : vector<1x8x32xf32> to vector<1x8x8xf32>
    %25 = vector.extract_strided_slice %22 {offsets = [0, 0, 0], sizes = [1, 8, 8], strides = [1, 1, 1]} : vector<1x8x32xf32> to vector<1x8x8xf32>
    %26 = vector.extract_strided_slice %23 {offsets = [0, 0, 0], sizes = [1, 8, 8], strides = [1, 1, 1]} : vector<1x8x32xf32> to vector<1x8x8xf32>
    "tpu.trace_start"() <{level = 10 : i32, message = "bqd,bkd->bqk"}> : () -> ()
    %cst_20 = arith.constant dense<0.000000e+00> : vector<1x8x8xf32>
    %27 = tpu.matmul %24, %25, %cst_20 {dimension_numbers = #tpu.dot_dimension_numbers<[2], [2], [1], [1], [0, 0, 0, 1, 1, 1], [0], [0]>} : vector<1x8x8xf32>, vector<1x8x8xf32>, vector<1x8x8xf32> -> vector<1x8x8xf32>
    "tpu.trace_stop"() : () -> ()
    %cst_21 = arith.constant dense<0xFF800000> : vector<1x8xf32>
    %28 = vector.multi_reduction <maximumf>, %27, %cst_21 [2] : vector<1x8x8xf32> to vector<1x8xf32>
    %29 = vector.shape_cast %28 : vector<1x8xf32> to vector<1x8x1xf32>
    %30 = vector.broadcast %29 : vector<1x8x1xf32> to vector<1x8x8xf32>
    %31 = arith.subf %27, %30 : vector<1x8x8xf32>
    %32 = math.exp %31 : vector<1x8x8xf32>
    %cst_22 = arith.constant dense<0.000000e+00> : vector<1x8xf32>
    %33 = vector.multi_reduction <add>, %32, %cst_22 [2] : vector<1x8x8xf32> to vector<1x8xf32>
    %34 = vector.shape_cast %33 : vector<1x8xf32> to vector<1x8x1xf32>
    %35 = vector.broadcast %34 : vector<1x8x1xf32> to vector<1x8x8xf32>
    %36 = arith.divf %32, %35 : vector<1x8x8xf32>
    "tpu.trace_start"() <{level = 10 : i32, message = "bqk,bkd->bqd"}> : () -> ()
    %cst_23 = arith.constant dense<0.000000e+00> : vector<1x8x8xf32>
    %37 = tpu.matmul %36, %26, %cst_23 {dimension_numbers = #tpu.dot_dimension_numbers<[2], [1], [1], [2], [0, 0, 0, 1, 1, 2], [0], [0]>} : vector<1x8x8xf32>, vector<1x8x8xf32>, vector<1x8x8xf32> -> vector<1x8x8xf32>
    "tpu.trace_stop"() : () -> ()
    %c0_24 = arith.constant 0 : index
    %c0_25 = arith.constant 0 : index
    %38 = vector.load %arg11[%c0_24, %c0_25] : memref<32x32xf32, #tpu.memory_space<vmem>>, vector<8x32xf32>
    %c0_26 = arith.constant 0 : index
    %c0_27 = arith.constant 0 : index
    %39 = vector.load %arg14[%c0_26, %c0_27] : memref<8x32xf32, #tpu.memory_space<vmem>>, vector<8x32xf32>
    %40 = vector.shape_cast %37 : vector<1x8x8xf32> to vector<8x8xf32>
    %cst_28 = arith.constant dense<0.000000e+00> : vector<8x32xf32>
    %41 = tpu.matmul %40, %38, %cst_28 {dimension_numbers = #tpu.dot_dimension_numbers<[1], [0], [0], [1], [0, 0, 1, 1], [], []>} : vector<8x8xf32>, vector<8x32xf32>, vector<8x32xf32> -> vector<8x32xf32>
    %42 = arith.addf %39, %41 : vector<8x32xf32>
    %c0_29 = arith.constant 0 : index
    %c0_30 = arith.constant 0 : index
    %43 = vector.load %arg14[%c0_29, %c0_30] : memref<8x32xf32, #tpu.memory_space<vmem>>, vector<8x32xf32>
    tpu.vector_store %arg14[%c0_29, %c0_30], %42 {strides = array<i32>} : memref<8x32xf32, #tpu.memory_space<vmem>>, vector<8x32xf32>,
    %44 = vector.extract_strided_slice %21 {offsets = [0, 0, 8], sizes = [1, 8, 8], strides = [1, 1, 1]} : vector<1x8x32xf32> to vector<1x8x8xf32>
    %45 = vector.extract_strided_slice %22 {offsets = [0, 0, 8], sizes = [1, 8, 8], strides = [1, 1, 1]} : vector<1x8x32xf32> to vector<1x8x8xf32>
    %46 = vector.extract_strided_slice %23 {offsets = [0, 0, 8], sizes = [1, 8, 8], strides = [1, 1, 1]} : vector<1x8x32xf32> to vector<1x8x8xf32>
    "tpu.trace_start"() <{level = 10 : i32, message = "bqd,bkd->bqk"}> : () -> ()
    %cst_31 = arith.constant dense<0.000000e+00> : vector<1x8x8xf32>
    %47 = tpu.matmul %44, %45, %cst_31 {dimension_numbers = #tpu.dot_dimension_numbers<[2], [2], [1], [1], [0, 0, 0, 1, 1, 1], [0], [0]>} : vector<1x8x8xf32>, vector<1x8x8xf32>, vector<1x8x8xf32> -> vector<1x8x8xf32>
    "tpu.trace_stop"() : () -> ()
    %cst_32 = arith.constant dense<0xFF800000> : vector<1x8xf32>
    %48 = vector.multi_reduction <maximumf>, %47, %cst_32 [2] : vector<1x8x8xf32> to vector<1x8xf32>
    %49 = vector.shape_cast %48 : vector<1x8xf32> to vector<1x8x1xf32>
    %50 = vector.broadcast %49 : vector<1x8x1xf32> to vector<1x8x8xf32>
    %51 = arith.subf %47, %50 : vector<1x8x8xf32>
    %52 = math.exp %51 : vector<1x8x8xf32>
    %cst_33 = arith.constant dense<0.000000e+00> : vector<1x8xf32>
    %53 = vector.multi_reduction <add>, %52, %cst_33 [2] : vector<1x8x8xf32> to vector<1x8xf32>
    %54 = vector.shape_cast %53 : vector<1x8xf32> to vector<1x8x1xf32>
    %55 = vector.broadcast %54 : vector<1x8x1xf32> to vector<1x8x8xf32>
    %56 = arith.divf %52, %55 : vector<1x8x8xf32>
    "tpu.trace_start"() <{level = 10 : i32, message = "bqk,bkd->bqd"}> : () -> ()
    %cst_34 = arith.constant dense<0.000000e+00> : vector<1x8x8xf32>
    %57 = tpu.matmul %56, %46, %cst_34 {dimension_numbers = #tpu.dot_dimension_numbers<[2], [1], [1], [2], [0, 0, 0, 1, 1, 2], [0], [0]>} : vector<1x8x8xf32>, vector<1x8x8xf32>, vector<1x8x8xf32> -> vector<1x8x8xf32>
    "tpu.trace_stop"() : () -> ()
    %c8 = arith.constant 8 : index
    %c0_35 = arith.constant 0 : index
    %58 = vector.load %arg11[%c8, %c0_35] : memref<32x32xf32, #tpu.memory_space<vmem>>, vector<8x32xf32>
    %c0_36 = arith.constant 0 : index
    %c0_37 = arith.constant 0 : index
    %59 = vector.load %arg14[%c0_36, %c0_37] : memref<8x32xf32, #tpu.memory_space<vmem>>, vector<8x32xf32>
    %60 = vector.shape_cast %57 : vector<1x8x8xf32> to vector<8x8xf32>
    %cst_38 = arith.constant dense<0.000000e+00> : vector<8x32xf32>
    %61 = tpu.matmul %60, %58, %cst_38 {dimension_numbers = #tpu.dot_dimension_numbers<[1], [0], [0], [1], [0, 0, 1, 1], [], []>} : vector<8x8xf32>, vector<8x32xf32>, vector<8x32xf32> -> vector<8x32xf32>
    %62 = arith.addf %59, %61 : vector<8x32xf32>
    %c0_39 = arith.constant 0 : index
    %c0_40 = arith.constant 0 : index
    %63 = vector.load %arg14[%c0_39, %c0_40] : memref<8x32xf32, #tpu.memory_space<vmem>>, vector<8x32xf32>
    tpu.vector_store %arg14[%c0_39, %c0_40], %62 {strides = array<i32>} : memref<8x32xf32, #tpu.memory_space<vmem>>, vector<8x32xf32>,
    %64 = vector.extract_strided_slice %21 {offsets = [0, 0, 16], sizes = [1, 8, 8], strides = [1, 1, 1]} : vector<1x8x32xf32> to vector<1x8x8xf32>
    %65 = vector.extract_strided_slice %22 {offsets = [0, 0, 16], sizes = [1, 8, 8], strides = [1, 1, 1]} : vector<1x8x32xf32> to vector<1x8x8xf32>
    %66 = vector.extract_strided_slice %23 {offsets = [0, 0, 16], sizes = [1, 8, 8], strides = [1, 1, 1]} : vector<1x8x32xf32> to vector<1x8x8xf32>
    "tpu.trace_start"() <{level = 10 : i32, message = "bqd,bkd->bqk"}> : () -> ()
    %cst_41 = arith.constant dense<0.000000e+00> : vector<1x8x8xf32>
    %67 = tpu.matmul %64, %65, %cst_41 {dimension_numbers = #tpu.dot_dimension_numbers<[2], [2], [1], [1], [0, 0, 0, 1, 1, 1], [0], [0]>} : vector<1x8x8xf32>, vector<1x8x8xf32>, vector<1x8x8xf32> -> vector<1x8x8xf32>
    "tpu.trace_stop"() : () -> ()
    %cst_42 = arith.constant dense<0xFF800000> : vector<1x8xf32>
    %68 = vector.multi_reduction <maximumf>, %67, %cst_42 [2] : vector<1x8x8xf32> to vector<1x8xf32>
    %69 = vector.shape_cast %68 : vector<1x8xf32> to vector<1x8x1xf32>
    %70 = vector.broadcast %69 : vector<1x8x1xf32> to vector<1x8x8xf32>
    %71 = arith.subf %67, %70 : vector<1x8x8xf32>
    %72 = math.exp %71 : vector<1x8x8xf32>
    %cst_43 = arith.constant dense<0.000000e+00> : vector<1x8xf32>
    %73 = vector.multi_reduction <add>, %72, %cst_43 [2] : vector<1x8x8xf32> to vector<1x8xf32>
    %74 = vector.shape_cast %73 : vector<1x8xf32> to vector<1x8x1xf32>
    %75 = vector.broadcast %74 : vector<1x8x1xf32> to vector<1x8x8xf32>
    %76 = arith.divf %72, %75 : vector<1x8x8xf32>
    "tpu.trace_start"() <{level = 10 : i32, message = "bqk,bkd->bqd"}> : () -> ()
    %cst_44 = arith.constant dense<0.000000e+00> : vector<1x8x8xf32>
    %77 = tpu.matmul %76, %66, %cst_44 {dimension_numbers = #tpu.dot_dimension_numbers<[2], [1], [1], [2], [0, 0, 0, 1, 1, 2], [0], [0]>} : vector<1x8x8xf32>, vector<1x8x8xf32>, vector<1x8x8xf32> -> vector<1x8x8xf32>
    "tpu.trace_stop"() : () -> ()
    %c16 = arith.constant 16 : index
    %c0_45 = arith.constant 0 : index
    %78 = vector.load %arg11[%c16, %c0_45] : memref<32x32xf32, #tpu.memory_space<vmem>>, vector<8x32xf32>
    %c0_46 = arith.constant 0 : index
    %c0_47 = arith.constant 0 : index
    %79 = vector.load %arg14[%c0_46, %c0_47] : memref<8x32xf32, #tpu.memory_space<vmem>>, vector<8x32xf32>
    %80 = vector.shape_cast %77 : vector<1x8x8xf32> to vector<8x8xf32>
    %cst_48 = arith.constant dense<0.000000e+00> : vector<8x32xf32>
    %81 = tpu.matmul %80, %78, %cst_48 {dimension_numbers = #tpu.dot_dimension_numbers<[1], [0], [0], [1], [0, 0, 1, 1], [], []>} : vector<8x8xf32>, vector<8x32xf32>, vector<8x32xf32> -> vector<8x32xf32>
    %82 = arith.addf %79, %81 : vector<8x32xf32>
    %c0_49 = arith.constant 0 : index
    %c0_50 = arith.constant 0 : index
    %83 = vector.load %arg14[%c0_49, %c0_50] : memref<8x32xf32, #tpu.memory_space<vmem>>, vector<8x32xf32>
    tpu.vector_store %arg14[%c0_49, %c0_50], %82 {strides = array<i32>} : memref<8x32xf32, #tpu.memory_space<vmem>>, vector<8x32xf32>,
    %84 = vector.extract_strided_slice %21 {offsets = [0, 0, 24], sizes = [1, 8, 8], strides = [1, 1, 1]} : vector<1x8x32xf32> to vector<1x8x8xf32>
    %85 = vector.extract_strided_slice %22 {offsets = [0, 0, 24], sizes = [1, 8, 8], strides = [1, 1, 1]} : vector<1x8x32xf32> to vector<1x8x8xf32>
    %86 = vector.extract_strided_slice %23 {offsets = [0, 0, 24], sizes = [1, 8, 8], strides = [1, 1, 1]} : vector<1x8x32xf32> to vector<1x8x8xf32>
    "tpu.trace_start"() <{level = 10 : i32, message = "bqd,bkd->bqk"}> : () -> ()
    %cst_51 = arith.constant dense<0.000000e+00> : vector<1x8x8xf32>
    %87 = tpu.matmul %84, %85, %cst_51 {dimension_numbers = #tpu.dot_dimension_numbers<[2], [2], [1], [1], [0, 0, 0, 1, 1, 1], [0], [0]>} : vector<1x8x8xf32>, vector<1x8x8xf32>, vector<1x8x8xf32> -> vector<1x8x8xf32>
    "tpu.trace_stop"() : () -> ()
    %cst_52 = arith.constant dense<0xFF800000> : vector<1x8xf32>
    %88 = vector.multi_reduction <maximumf>, %87, %cst_52 [2] : vector<1x8x8xf32> to vector<1x8xf32>
    %89 = vector.shape_cast %88 : vector<1x8xf32> to vector<1x8x1xf32>
    %90 = vector.broadcast %89 : vector<1x8x1xf32> to vector<1x8x8xf32>
    %91 = arith.subf %87, %90 : vector<1x8x8xf32>
    %92 = math.exp %91 : vector<1x8x8xf32>
    %cst_53 = arith.constant dense<0.000000e+00> : vector<1x8xf32>
    %93 = vector.multi_reduction <add>, %92, %cst_53 [2] : vector<1x8x8xf32> to vector<1x8xf32>
    %94 = vector.shape_cast %93 : vector<1x8xf32> to vector<1x8x1xf32>
    %95 = vector.broadcast %94 : vector<1x8x1xf32> to vector<1x8x8xf32>
    %96 = arith.divf %92, %95 : vector<1x8x8xf32>
    "tpu.trace_start"() <{level = 10 : i32, message = "bqk,bkd->bqd"}> : () -> ()
    %cst_54 = arith.constant dense<0.000000e+00> : vector<1x8x8xf32>
    %97 = tpu.matmul %96, %86, %cst_54 {dimension_numbers = #tpu.dot_dimension_numbers<[2], [1], [1], [2], [0, 0, 0, 1, 1, 2], [0], [0]>} : vector<1x8x8xf32>, vector<1x8x8xf32>, vector<1x8x8xf32> -> vector<1x8x8xf32>
    "tpu.trace_stop"() : () -> ()
    %c24 = arith.constant 24 : index
    %c0_55 = arith.constant 0 : index
    %98 = vector.load %arg11[%c24, %c0_55] : memref<32x32xf32, #tpu.memory_space<vmem>>, vector<8x32xf32>
    %c0_56 = arith.constant 0 : index
    %c0_57 = arith.constant 0 : index
    %99 = vector.load %arg14[%c0_56, %c0_57] : memref<8x32xf32, #tpu.memory_space<vmem>>, vector<8x32xf32>
    %100 = vector.shape_cast %97 : vector<1x8x8xf32> to vector<8x8xf32>
    %cst_58 = arith.constant dense<0.000000e+00> : vector<8x32xf32>
    %101 = tpu.matmul %100, %98, %cst_58 {dimension_numbers = #tpu.dot_dimension_numbers<[1], [0], [0], [1], [0, 0, 1, 1], [], []>} : vector<8x8xf32>, vector<8x32xf32>, vector<8x32xf32> -> vector<8x32xf32>
    %102 = arith.addf %99, %101 : vector<8x32xf32>
    %c0_59 = arith.constant 0 : index
    %c0_60 = arith.constant 0 : index
    %103 = vector.load %arg14[%c0_59, %c0_60] : memref<8x32xf32, #tpu.memory_space<vmem>>, vector<8x32xf32>
    tpu.vector_store %arg14[%c0_59, %c0_60], %102 {strides = array<i32>} : memref<8x32xf32, #tpu.memory_space<vmem>>, vector<8x32xf32>,
    %c0_i32_61 = arith.constant 0 : i32
    %104 = arith.cmpi eq, %arg1, %c0_i32_61 : i32
    %105 = arith.extui %104 : i1 to i32
    %c0_i32_62 = arith.constant 0 : i32
    %106 = arith.cmpi ne, %105, %c0_i32_62 : i32
    scf.if %106 {
      %c0_63 = arith.constant 0 : index
      %c0_64 = arith.constant 0 : index
      %107 = vector.load %arg14[%c0_63, %c0_64] : memref<8x32xf32, #tpu.memory_space<vmem>>, vector<8x32xf32>
      %c0_65 = arith.constant 0 : index
      %c0_66 = arith.constant 0 : index
      %108 = vector.load %arg12[%c0_65, %c0_66] : memref<1x32xf32, #tpu.memory_space<vmem>>, vector<1x32xf32>
      %109 = vector.broadcast %108 : vector<1x32xf32> to vector<8x32xf32>
      %110 = arith.addf %107, %109 : vector<8x32xf32>
      %c0_67 = arith.constant 0 : index
      %c0_68 = arith.constant 0 : index
      %111 = vector.load %arg13[%c0_67, %c0_68] : memref<8x32xf32, #tpu.memory_space<vmem>>, vector<8x32xf32>
      tpu.vector_store %arg13[%c0_67, %c0_68], %110 {strides = array<i32>} : memref<8x32xf32, #tpu.memory_space<vmem>>, vector<8x32xf32>,
    } else {
    }
    return
  }
  func.func @transform_0(%arg0: i32, %arg1: i32) -> (i32, i32) {
    %c0_i32 = arith.constant 0 : i32
    %c0_i32_0 = arith.constant 0 : i32
    return %arg0, %c0_i32 : i32, i32
  }
  func.func @transform_1(%arg0: i32, %arg1: i32) -> (i32, i32) {
    %c0_i32 = arith.constant 0 : i32
    %c0_i32_0 = arith.constant 0 : i32
    return %arg0, %c0_i32 : i32, i32
  }
  func.func @transform_2(%arg0: i32, %arg1: i32) -> (i32, i32) {
    %c0_i32 = arith.constant 0 : i32
    %c0_i32_0 = arith.constant 0 : i32
    return %arg0, %c0_i32 : i32, i32
  }
  func.func @transform_3(%arg0: i32, %arg1: i32) -> (i32, i32) {
    %c0_i32 = arith.constant 0 : i32
    %c0_i32_0 = arith.constant 0 : i32
    return %c0_i32, %arg1 : i32, i32
  }
  func.func @transform_4(%arg0: i32, %arg1: i32) -> (i32, i32) {
    %c0_i32 = arith.constant 0 : i32
    %c0_i32_0 = arith.constant 0 : i32
    return %c0_i32, %arg1 : i32, i32
  }
  func.func @transform_5(%arg0: i32, %arg1: i32) -> (i32, i32) {
    %c0_i32 = arith.constant 0 : i32
    %c0_i32_0 = arith.constant 0 : i32
    return %c0_i32, %arg1 : i32, i32
  }
  func.func @transform_6(%arg0: i32, %arg1: i32) -> (i32, i32) {
    %c0_i32 = arith.constant 0 : i32
    %c0_i32_0 = arith.constant 0 : i32
    return %c0_i32, %arg1 : i32, i32
  }
  func.func @transform_7(%arg0: i32, %arg1: i32) -> (i32, i32) {
    %c0_i32 = arith.constant 0 : i32
    %c0_i32_0 = arith.constant 0 : i32
    return %c0_i32, %arg1 : i32, i32
  }
  func.func @transform_8(%arg0: i32, %arg1: i32) -> (i32, i32) {
    %c0_i32 = arith.constant 0 : i32
    %c0_i32_0 = arith.constant 0 : i32
    return %c0_i32, %arg1 : i32, i32
  }
  func.func @transform_9(%arg0: i32, %arg1: i32) -> (i32, i32) {
    %c0_i32 = arith.constant 0 : i32
    %c0_i32_0 = arith.constant 0 : i32
    return %arg1, %c0_i32 : i32, i32
  }
  func.func @transform_10(%arg0: i32, %arg1: i32) -> (i32, i32) {
    %c0_i32 = arith.constant 0 : i32
    %c0_i32_0 = arith.constant 0 : i32
    %c0_i32_1 = arith.constant 0 : i32
    return %c0_i32, %c0_i32_0 : i32, i32
  }
  func.func @transform_11(%arg0: i32, %arg1: i32) -> (i32, i32) {
    %c0_i32 = arith.constant 0 : i32
    %c0_i32_0 = arith.constant 0 : i32
    return %arg0, %c0_i32 : i32, i32
  }
}

</mosaic_0001>

<llo_original>
// kernel: tpu_custom_call.1
$region0: #{tpu_custom_call.1}
  #allocation0 [shape = 'u32[]', space=smem, size = 0x4, offset = 0x4, fixed_abs, tag = 'smem constant byte address 0x4 - core index']
  #allocation1 [shape = 'u32[144,128]{1,0:T(1,128)}', space=vmem, size = 0x12000, scoped, tag = 'internal scratch']
  #allocation2 [shape = 'f32[8,32]{1,0:T(8,128)}', space=vmem, size = 0x1000, scoped, tag = 'scratch operand']
  %s0 = inlined_call_operand.hbm [shape: f32[16,16], index: 0, kind: input, shape index: {}]
  %s1 = inlined_call_operand.hbm [shape: f32[16,24], index: 1, kind: input, shape index: {}]
  %s2 = inlined_call_operand.hbm [shape: f32[16,24], index: 2, kind: input, shape index: {}]
  %s3 = inlined_call_operand.hbm [shape: f32[16,32], index: 3, kind: input, shape index: {}]
  %s4 = inlined_call_operand.vmem [shape: f32[1,32], index: 4, kind: input, shape index: {}]
  %s5 = inlined_call_operand.hbm [shape: f32[24,32], index: 5, kind: input, shape index: {}]
  %s6 = inlined_call_operand.vmem [shape: f32[1,32], index: 6, kind: input, shape index: {}]
  %s7 = inlined_call_operand.hbm [shape: f32[24,32], index: 7, kind: input, shape index: {}]
  %s8 = inlined_call_operand.hbm [shape: f32[1,32], index: 8, kind: input, shape index: {}]
  %s9 = inlined_call_operand.vmem [shape: f32[32,32], index: 9, kind: input, shape index: {}]
  %s10 = inlined_call_operand.vmem [shape: f32[1,32], index: 10, kind: input, shape index: {}]
  %s11 = inlined_call_operand.hbm [shape: f32[16,32], index: 11, kind: output, shape index: {}]
  %s12 = sld [smem:[#allocation0]]
  $region113: #{tpu_custom_call.1} parent=0
    _
  %s14 = ssub.s32 1, %s12
  %s15 = scalar_select 0, %s14, %s12
  $region1: #{tpu_custom_call.1} parent=0
    #allocation3 [shape = 'u8[8192]{0}', space=vmem, size = 0x2000, scoped, tag = 'input window, operand 0']
    #allocation4 [shape = 's32[2]{0}', space=sflag, size = 0x8, scoped, tag = 'scoped memory for tpu_custom_call.1']
    #allocation5 [shape = 's32[2]{0}', space=sflag, size = 0x8, scoped, tag = 'scoped memory for tpu_custom_call.1']
    #allocation6 [shape = 'u8[8192]{0}', space=vmem, size = 0x2000, scoped, tag = 'input window, operand 1']
    #allocation7 [shape = 's32[2]{0}', space=sflag, size = 0x8, scoped, tag = 'scoped memory for tpu_custom_call.1']
    #allocation8 [shape = 'u8[8192]{0}', space=vmem, size = 0x2000, scoped, tag = 'input window, operand 2']
    #allocation9 [shape = 'u8[8192]{0}', space=vmem, size = 0x2000, scoped, tag = 'input window, operand 3, single buffered']
    #allocation10 [shape = 's32[1]{0}', space=sflag, size = 0x4, scoped, tag = 'scoped memory for tpu_custom_call.1']
    #allocation11 [shape = 'u8[12288]{0}', space=vmem, size = 0x3000, scoped, tag = 'input window, operand 5, single buffered']
    #allocation12 [shape = 'u8[12288]{0}', space=vmem, size = 0x3000, scoped, tag = 'input window, operand 7, single buffered']
    #allocation13 [shape = 's32[1]{0}', space=sflag, size = 0x4, scoped, tag = 'scoped memory for tpu_custom_call.1']
    #allocation14 [shape = 'u8[512]{0}', space=vmem, size = 0x400, scoped, tag = 'input window, operand 8, single buffered']
    #allocation15 [shape = 'u8[8192]{0}', space=vmem, size = 0x2000, scoped, tag = 'output window, operand 0']
    %16 = vsyncpa [#allocation4], 0
    %s17 = scalar_lea.sflag [#allocation4], 1
    %18 = vsyncpa %s17, 0
    %19 = vsyncpa [#allocation7], 0
    %s20 = scalar_lea.sflag [#allocation7], 1
    %21 = vsyncpa %s20, 0
    %22 = vsyncpa [#allocation10], 0
    %23 = vsyncpa [#allocation13], 0
    %24 = vsyncpa [#allocation5], 0
    %s25 = scalar_lea.sflag [#allocation5], 1
    %26 = vsyncpa %s25, 0
    loop: start=0, step=1, limit=4
    $region2: #{tpu_custom_call.1} parent=1 // loop_pre_header
      _
    $region3: #{tpu_custom_call.1} parent=1 // loop_header
      %s28 = sphi 0, %s32
      %p29 = scmp.ge.s32.totalorder %s28, 4
      %s35 = sphi 0, %s47
      %s36 = sphi 0, %s43
      %s37 = sphi 0, %s35
      %s38 = sphi 0, %s36
      %s39 = sphi 0, %s37
      %s40 = sphi 0, %s38
      %s50 = sphi 0, %s52
      %s53 = sphi 0, %s50
      %s54 = sphi 0, %s53
      %s70 = sphi 0, %s54
      %s76 = sphi 0, %s78
      %s79 = sphi 0, %s76
      %s80 = sphi 0, %s79
      %s96 = sphi 0, %s80
      %s102 = sphi 0, %s104
      %s105 = sphi 0, %s102
      %s106 = sphi 0, %s105
      %s122 = sphi 0, %s106
      %s128 = sphi 0, %s130
      %s131 = sphi 0, %s128
      %s132 = sphi 0, %s131
      %s148 = sphi 0, %s132
      %s154 = sphi 0, %s156
      %s157 = sphi 0, %s154
      %s158 = sphi 0, %s157
      %s174 = sphi 0, %s158
      %s180 = sphi 0, %s182
      %s183 = sphi 0, %s180
      %s184 = sphi 0, %s183
      %s200 = sphi 0, %s184
      %s206 = sphi 0, %s208
      %s209 = sphi 0, %s206
      %s210 = sphi 0, %s209
      %s226 = sphi 0, %s210
      %s232 = sphi 0, %s234
      %s235 = sphi 0, %s232
      %s236 = sphi 0, %s235
      %s252 = sphi 0, %s236
      %s258 = sphi 0, %s260
      %s261 = sphi 0, %s258
      %s262 = sphi 0, %s261
      %s278 = sphi 0, %s262
      %s284 = sphi 0, %s286
      %s287 = sphi 0, %s284
      %s288 = sphi 0, %s287
      %s304 = sphi 0, %s288
      %s308 = sphi 0, %s308
      %s310 = sphi 0, %s308
      %s311 = sphi 0, %s310
      %s325 = sphi 0, %s311
      %s331 = sphi 0, %s333
      %s334 = sphi 0, %s331
      %s335 = sphi 0, %s334
      %s351 = sphi 0, %s335
    $region4: #{tpu_custom_call.1} parent=1 // loop_header_branch
      %31 = sbr.rel (%p29) target = $region8
    $region5: #{tpu_custom_call.1} parent=1 // loop_body
      %s33 = ssub.s32 %s28, 1
      %s34 = ssub.s32 %s28, 2
      %s41 = sadd.s32 1, %s36
      %p42 = scmp.ge.s32.totalorder %s41, 1
      %s43 = scalar_select %p42, 0, %s41
      %s44 = sadd.s32 1, %s35
      %s45 = scalar_select %p42, %s44, %s35
      %p46 = scmp.ge.s32.totalorder %s45, 2
      %s47 = scalar_select %p46, 0, %s45
      %s48 = ssub.s32 %s35, %s47
      %p49 = scmp.eq.s32.totalorder %s48, 0
      %s51 = sadd.s32 %s50, 1
      %s52 = scalar_select %p49, %s50, %s51
      %p55 = pneg %p49
      %p56 = scmp.eq.s32.totalorder %s28, 1
      %p57 = por %p55, %p56
      %p58 = scmp.ne.s32.totalorder %s50, %s53
      %p59 = scmp.eq.s32.totalorder %s28, 0
      %p60 = por %p58, %p59
      %p61 = scmp.ne.s32.totalorder %s50, %s53
      %p62 = scmp.eq.s32.totalorder %s33, 1
      %p63 = por %p61, %p62
      %p64 = scmp.ne.s32.totalorder %s53, %s54
      %p65 = scmp.eq.s32.totalorder %s33, 0
      %p66 = por %p64, %p65
      %p67 = scmp.ne.s32.totalorder %s53, %s54
      %p68 = scmp.eq.s32.totalorder %s34, 1
      %p69 = por %p67, %p68
      %p71 = scmp.ne.s32.totalorder %s54, %s70
      %p72 = scmp.eq.s32.totalorder %s34, 0
      %p73 = por %p71, %p72
      %s74 = ssub.s32 %s35, %s47
      %p75 = scmp.eq.s32.totalorder %s74, 0
      %s77 = sadd.s32 %s76, 1
      %s78 = scalar_select %p75, %s76, %s77
      %p81 = pneg %p75
      %p82 = scmp.eq.s32.totalorder %s28, 1
      %p83 = por %p81, %p82
      %p84 = scmp.ne.s32.totalorder %s76, %s79
      %p85 = scmp.eq.s32.totalorder %s28, 0
      %p86 = por %p84, %p85
      %p87 = scmp.ne.s32.totalorder %s76, %s79
      %p88 = scmp.eq.s32.totalorder %s33, 1
      %p89 = por %p87, %p88
      %p90 = scmp.ne.s32.totalorder %s79, %s80
      %p91 = scmp.eq.s32.totalorder %s33, 0
      %p92 = por %p90, %p91
      %p93 = scmp.ne.s32.totalorder %s79, %s80
      %p94 = scmp.eq.s32.totalorder %s34, 1
      %p95 = por %p93, %p94
      %p97 = scmp.ne.s32.totalorder %s80, %s96
      %p98 = scmp.eq.s32.totalorder %s34, 0
      %p99 = por %p97, %p98
      %s100 = ssub.s32 %s35, %s47
      %p101 = scmp.eq.s32.totalorder %s100, 0
      %s103 = sadd.s32 %s102, 1
      %s104 = scalar_select %p101, %s102, %s103
      %p107 = pneg %p101
      %p108 = scmp.eq.s32.totalorder %s28, 1
      %p109 = por %p107, %p108
      %p110 = scmp.ne.s32.totalorder %s102, %s105
      %p111 = scmp.eq.s32.totalorder %s28, 0
      %p112 = por %p110, %p111
      %p113 = scmp.ne.s32.totalorder %s102, %s105
      %p114 = scmp.eq.s32.totalorder %s33, 1
      %p115 = por %p113, %p114
      %p116 = scmp.ne.s32.totalorder %s105, %s106
      %p117 = scmp.eq.s32.totalorder %s33, 0
      %p118 = por %p116, %p117
      %p119 = scmp.ne.s32.totalorder %s105, %s106
      %p120 = scmp.eq.s32.totalorder %s34, 1
      %p121 = por %p119, %p120
      %p123 = scmp.ne.s32.totalorder %s106, %s122
      %p124 = scmp.eq.s32.totalorder %s34, 0
      %p125 = por %p123, %p124
      %s126 = ssub.s32 %s36, %s43
      %p127 = scmp.eq.s32.totalorder %s126, 0
      %s129 = sadd.s32 %s128, 1
      %s130 = scalar_select %p127, %s128, %s129
      %p133 = pneg %p127
      %p134 = scmp.eq.s32.totalorder %s28, 1
      %p135 = por %p133, %p134
      %p136 = scmp.ne.s32.totalorder %s128, %s131
      %p137 = scmp.eq.s32.totalorder %s28, 0
      %p138 = por %p136, %p137
      %p139 = scmp.ne.s32.totalorder %s128, %s131
      %p140 = scmp.eq.s32.totalorder %s33, 1
      %p141 = por %p139, %p140
      %p142 = scmp.ne.s32.totalorder %s131, %s132
      %p143 = scmp.eq.s32.totalorder %s33, 0
      %p144 = por %p142, %p143
      %p145 = scmp.ne.s32.totalorder %s131, %s132
      %p146 = scmp.eq.s32.totalorder %s34, 1
      %p147 = por %p145, %p146
      %p149 = scmp.ne.s32.totalorder %s132, %s148
      %p150 = scmp.eq.s32.totalorder %s34, 0
      %p151 = por %p149, %p150
      %s152 = ssub.s32 %s36, %s43
      %p153 = scmp.eq.s32.totalorder %s152, 0
      %s155 = sadd.s32 %s154, 1
      %s156 = scalar_select %p153, %s154, %s155
      %p159 = pneg %p153
      %p160 = scmp.eq.s32.totalorder %s28, 1
      %p161 = por %p159, %p160
      %p162 = scmp.ne.s32.totalorder %s154, %s157
      %p163 = scmp.eq.s32.totalorder %s28, 0
      %p164 = por %p162, %p163
      %p165 = scmp.ne.s32.totalorder %s154, %s157
      %p166 = scmp.eq.s32.totalorder %s33, 1
      %p167 = por %p165, %p166
      %p168 = scmp.ne.s32.totalorder %s157, %s158
      %p169 = scmp.eq.s32.totalorder %s33, 0
      %p170 = por %p168, %p169
      %p171 = scmp.ne.s32.totalorder %s157, %s158
      %p172 = scmp.eq.s32.totalorder %s34, 1
      %p173 = por %p171, %p172
      %p175 = scmp.ne.s32.totalorder %s158, %s174
      %p176 = scmp.eq.s32.totalorder %s34, 0
      %p177 = por %p175, %p176
      %s178 = ssub.s32 %s36, %s43
      %p179 = scmp.eq.s32.totalorder %s178, 0
      %s181 = sadd.s32 %s180, 1
      %s182 = scalar_select %p179, %s180, %s181
      %p185 = pneg %p179
      %p186 = scmp.eq.s32.totalorder %s28, 1
      %p187 = por %p185, %p186
      %p188 = scmp.ne.s32.totalorder %s180, %s183
      %p189 = scmp.eq.s32.totalorder %s28, 0
      %p190 = por %p188, %p189
      %p191 = scmp.ne.s32.totalorder %s180, %s183
      %p192 = scmp.eq.s32.totalorder %s33, 1
      %p193 = por %p191, %p192
      %p194 = scmp.ne.s32.totalorder %s183, %s184
      %p195 = scmp.eq.s32.totalorder %s33, 0
      %p196 = por %p194, %p195
      %p197 = scmp.ne.s32.totalorder %s183, %s184
      %p198 = scmp.eq.s32.totalorder %s34, 1
      %p199 = por %p197, %p198
      %p201 = scmp.ne.s32.totalorder %s184, %s200
      %p202 = scmp.eq.s32.totalorder %s34, 0
      %p203 = por %p201, %p202
      %s204 = ssub.s32 %s36, %s43
      %p205 = scmp.eq.s32.totalorder %s204, 0
      %s207 = sadd.s32 %s206, 1
      %s208 = scalar_select %p205, %s206, %s207
      %p211 = pneg %p205
      %p212 = scmp.eq.s32.totalorder %s28, 1
      %p213 = por %p211, %p212
      %p214 = scmp.ne.s32.totalorder %s206, %s209
      %p215 = scmp.eq.s32.totalorder %s28, 0
      %p216 = por %p214, %p215
      %p217 = scmp.ne.s32.totalorder %s206, %s209
      %p218 = scmp.eq.s32.totalorder %s33, 1
      %p219 = por %p217, %p218
      %p220 = scmp.ne.s32.totalorder %s209, %s210
      %p221 = scmp.eq.s32.totalorder %s33, 0
      %p222 = por %p220, %p221
      %p223 = scmp.ne.s32.totalorder %s209, %s210
      %p224 = scmp.eq.s32.totalorder %s34, 1
      %p225 = por %p223, %p224
      %p227 = scmp.ne.s32.totalorder %s210, %s226
      %p228 = scmp.eq.s32.totalorder %s34, 0
      %p229 = por %p227, %p228
      %s230 = ssub.s32 %s36, %s43
      %p231 = scmp.eq.s32.totalorder %s230, 0
      %s233 = sadd.s32 %s232, 1
      %s234 = scalar_select %p231, %s232, %s233
      %p237 = pneg %p231
      %p238 = scmp.eq.s32.totalorder %s28, 1
      %p239 = por %p237, %p238
      %p240 = scmp.ne.s32.totalorder %s232, %s235
      %p241 = scmp.eq.s32.totalorder %s28, 0
      %p242 = por %p240, %p241
      %p243 = scmp.ne.s32.totalorder %s232, %s235
      %p244 = scmp.eq.s32.totalorder %s33, 1
      %p245 = por %p243, %p244
      %p246 = scmp.ne.s32.totalorder %s235, %s236
      %p247 = scmp.eq.s32.totalorder %s33, 0
      %p248 = por %p246, %p247
      %p249 = scmp.ne.s32.totalorder %s235, %s236
      %p250 = scmp.eq.s32.totalorder %s34, 1
      %p251 = por %p249, %p250
      %p253 = scmp.ne.s32.totalorder %s236, %s252
      %p254 = scmp.eq.s32.totalorder %s34, 0
      %p255 = por %p253, %p254
      %s256 = ssub.s32 %s36, %s43
      %p257 = scmp.eq.s32.totalorder %s256, 0
      %s259 = sadd.s32 %s258, 1
      %s260 = scalar_select %p257, %s258, %s259
      %p263 = pneg %p257
      %p264 = scmp.eq.s32.totalorder %s28, 1
      %p265 = por %p263, %p264
      %p266 = scmp.ne.s32.totalorder %s258, %s261
      %p267 = scmp.eq.s32.totalorder %s28, 0
      %p268 = por %p266, %p267
      %p269 = scmp.ne.s32.totalorder %s258, %s261
      %p270 = scmp.eq.s32.totalorder %s33, 1
      %p271 = por %p269, %p270
      %p272 = scmp.ne.s32.totalorder %s261, %s262
      %p273 = scmp.eq.s32.totalorder %s33, 0
      %p274 = por %p272, %p273
      %p275 = scmp.ne.s32.totalorder %s261, %s262
      %p276 = scmp.eq.s32.totalorder %s34, 1
      %p277 = por %p275, %p276
      %p279 = scmp.ne.s32.totalorder %s262, %s278
      %p280 = scmp.eq.s32.totalorder %s34, 0
      %p281 = por %p279, %p280
      %s282 = ssub.s32 %s36, %s43
      %p283 = scmp.eq.s32.totalorder %s282, 0
      %s285 = sadd.s32 %s284, 1
      %s286 = scalar_select %p283, %s284, %s285
      %p289 = pneg %p283
      %p290 = scmp.eq.s32.totalorder %s28, 1
      %p291 = por %p289, %p290
      %p292 = scmp.ne.s32.totalorder %s284, %s287
      %p293 = scmp.eq.s32.totalorder %s28, 0
      %p294 = por %p292, %p293
      %p295 = scmp.ne.s32.totalorder %s284, %s287
      %p296 = scmp.eq.s32.totalorder %s33, 1
      %p297 = por %p295, %p296
      %p298 = scmp.ne.s32.totalorder %s287, %s288
      %p299 = scmp.eq.s32.totalorder %s33, 0
      %p300 = por %p298, %p299
      %p301 = scmp.ne.s32.totalorder %s287, %s288
      %p302 = scmp.eq.s32.totalorder %s34, 1
      %p303 = por %p301, %p302
      %p305 = scmp.ne.s32.totalorder %s288, %s304
      %p306 = scmp.eq.s32.totalorder %s34, 0
      %p307 = por %p305, %p306
      %s309 = sadd.s32 %s308, 1
      %p312 = scmp.eq.s32.totalorder %s28, 1
      %p313 = scmp.ne.s32.totalorder %s308, %s310
      %p314 = scmp.eq.s32.totalorder %s28, 0
      %p315 = por %p313, %p314
      %p316 = scmp.ne.s32.totalorder %s308, %s310
      %p317 = scmp.eq.s32.totalorder %s33, 1
      %p318 = por %p316, %p317
      %p319 = scmp.ne.s32.totalorder %s310, %s311
      %p320 = scmp.eq.s32.totalorder %s33, 0
      %p321 = por %p319, %p320
      %p322 = scmp.ne.s32.totalorder %s310, %s311
      %p323 = scmp.eq.s32.totalorder %s34, 1
      %p324 = por %p322, %p323
      %p326 = scmp.ne.s32.totalorder %s311, %s325
      %p327 = scmp.eq.s32.totalorder %s34, 0
      %p328 = por %p326, %p327
      %s329 = ssub.s32 %s35, %s47
      %p330 = scmp.eq.s32.totalorder %s329, 0
      %s332 = sadd.s32 %s331, 1
      %s333 = scalar_select %p330, %s331, %s332
      %p336 = pneg %p330
      %p337 = scmp.eq.s32.totalorder %s28, 1
      %p338 = por %p336, %p337
      %p339 = scmp.ne.s32.totalorder %s331, %s334
      %p340 = scmp.eq.s32.totalorder %s28, 0
      %p341 = por %p339, %p340
      %p342 = scmp.ne.s32.totalorder %s331, %s334
      %p343 = scmp.eq.s32.totalorder %s33, 1
      %p344 = por %p342, %p343
      %p345 = scmp.ne.s32.totalorder %s334, %s335
      %p346 = scmp.eq.s32.totalorder %s33, 0
      %p347 = por %p345, %p346
      %p348 = scmp.ne.s32.totalorder %s334, %s335
      %p349 = scmp.eq.s32.totalorder %s34, 1
      %p350 = por %p348, %p349
      %p352 = scmp.ne.s32.totalorder %s335, %s351
      %p353 = scmp.eq.s32.totalorder %s34, 0
      %p354 = por %p352, %p353
      %p355 = scmp.le.s32.totalorder 1, %s28
      %p356 = scmp.lt.s32.totalorder %s28, 3
      %p357 = pnand %p355, %p356
      %p358 = pneg %p357
      // Predicated region
      $region9: #{tpu_custom_call.1} parent=5 // pred_check
        _
      $region10: #{tpu_custom_call.1} parent=5 // pred_check_branch
        %360 = sbr.rel (%p357) target = $region12
      $region11: #{tpu_custom_call.1} parent=5 // pred_region
        %s361 = ssub.s32 %s28, 1
        // Predicated region
        $region13: #{tpu_custom_call.1} parent=11 // pred_check
          %p362 = pneg %p144
        $region14: #{tpu_custom_call.1} parent=11 // pred_check_branch
          %364 = sbr.rel (%p362) target = $region16
        $region15: #{tpu_custom_call.1} parent=11 // pred_region
          %s366 = ssub.s32 256, 256
          %367 = vsyncadd [#allocation10], %s366
          %s368 = smul.addr %s38, 128
          %s369 = scalar_lea.hbm %s3, %s368
          %s370 = sshll.u32 [#allocation9], 4
          %s371 = int_to_ptr.vmem [resolvable:$true] %s370
          %376 = dma.hbm_to_vmem [thread:$0]  %s369, 256, %s371, [#allocation10], 128, 128, 8
        $region16: #{tpu_custom_call.1} parent=11 // pred_fallthru
          _
        // Predicated region
        $region17: #{tpu_custom_call.1} parent=11 // pred_check
          %p377 = pneg %p170
        $region18: #{tpu_custom_call.1} parent=11 // pred_check_branch
          %379 = sbr.rel (%p377) target = $region20
        $region19: #{tpu_custom_call.1} parent=11 // pred_region
          %p380 = scmp.lt.s32.totalorder %s38, 0
          %s381 = scalar_select %p380, %s38, 0
          %s382 = scalar_lea.vmem %s4, %s381
        $region20: #{tpu_custom_call.1} parent=11 // pred_fallthru
          _
        // Predicated region
        $region21: #{tpu_custom_call.1} parent=11 // pred_check
          %p383 = pneg %p196
        $region22: #{tpu_custom_call.1} parent=11 // pred_check_branch
          %385 = sbr.rel (%p383) target = $region24
        $region23: #{tpu_custom_call.1} parent=11 // pred_region
          %s387 = ssub.s32 384, 384
          %388 = vsyncadd [#allocation10], %s387
          %s389 = smul.addr %s38, 128
          %s390 = scalar_lea.hbm %s5, %s389
          %s391 = sshll.u32 [#allocation11], 4
          %s392 = int_to_ptr.vmem [resolvable:$true] %s391
          %397 = dma.hbm_to_vmem [thread:$0]  %s390, 384, %s392, [#allocation10], 128, 128, 8
        $region24: #{tpu_custom_call.1} parent=11 // pred_fallthru
          _
        // Predicated region
        $region25: #{tpu_custom_call.1} parent=11 // pred_check
          %p398 = pneg %p222
        $region26: #{tpu_custom_call.1} parent=11 // pred_check_branch
          %400 = sbr.rel (%p398) target = $region28
        $region27: #{tpu_custom_call.1} parent=11 // pred_region
          %p401 = scmp.lt.s32.totalorder %s38, 0
          %s402 = scalar_select %p401, %s38, 0
          %s403 = scalar_lea.vmem %s6, %s402
        $region28: #{tpu_custom_call.1} parent=11 // pred_fallthru
          _
        // Predicated region
        $region29: #{tpu_custom_call.1} parent=11 // pred_check
          %p404 = pneg %p248
        $region30: #{tpu_custom_call.1} parent=11 // pred_check_branch
          %406 = sbr.rel (%p404) target = $region32
        $region31: #{tpu_custom_call.1} parent=11 // pred_region
          %s408 = ssub.s32 384, 384
          %409 = vsyncadd [#allocation13], %s408
          %s410 = smul.addr %s38, 128
          %s411 = scalar_lea.hbm %s7, %s410
          %s412 = sshll.u32 [#allocation12], 4
          %s413 = int_to_ptr.vmem [resolvable:$true] %s412
          %418 = dma.hbm_to_vmem [thread:$0]  %s411, 384, %s413, [#allocation13], 128, 128, 8
        $region32: #{tpu_custom_call.1} parent=11 // pred_fallthru
          _
        // Predicated region
        $region33: #{tpu_custom_call.1} parent=11 // pred_check
          %p419 = pneg %p274
        $region34: #{tpu_custom_call.1} parent=11 // pred_check_branch
          %421 = sbr.rel (%p419) target = $region36
        $region35: #{tpu_custom_call.1} parent=11 // pred_region
          %s423 = ssub.s32 16, 16
          %424 = vsyncadd [#allocation13], %s423
          %s425 = smul.addr %s38, 16
          %s426 = scalar_lea.hbm %s8, %s425
          %s428 = sshll.u32 [#allocation14], 4
          %s429 = int_to_ptr.vmem [resolvable:$true] %s428
          %431 = dma.hbm_to_vmem [thread:$0]  %s426, 16, %s429, [#allocation13]
        $region36: #{tpu_custom_call.1} parent=11 // pred_fallthru
          _
        // Predicated region
        $region37: #{tpu_custom_call.1} parent=11 // pred_check
          %p432 = pneg %p300
        $region38: #{tpu_custom_call.1} parent=11 // pred_check_branch
          %434 = sbr.rel (%p432) target = $region40
        $region39: #{tpu_custom_call.1} parent=11 // pred_region
          %s435 = smul.u32 4, %s38
          %p436 = scmp.lt.s32.totalorder %s435, 3
          %s437 = scalar_select %p436, %s435, 3
          %s438 = smul.addr %s437, 8
          %s439 = scalar_lea.vmem %s9, %s438
          %s440 = smul.u32 4, %s38
        $region40: #{tpu_custom_call.1} parent=11 // pred_fallthru
          _
        // Predicated region
        $region41: #{tpu_custom_call.1} parent=11 // pred_check
          %p441 = pneg %p321
        $region42: #{tpu_custom_call.1} parent=11 // pred_check_branch
          %443 = sbr.rel (%p441) target = $region44
        $region43: #{tpu_custom_call.1} parent=11 // pred_region
          _
        $region44: #{tpu_custom_call.1} parent=11 // pred_fallthru
          _
      $region12: #{tpu_custom_call.1} parent=5 // pred_fallthru
        _
      %p444 = scmp.lt.s32.totalorder %s28, 2
      // Predicated region
      $region45: #{tpu_custom_call.1} parent=5 // pred_check
        %p445 = pneg %p444
      $region46: #{tpu_custom_call.1} parent=5 // pred_check_branch
        %447 = sbr.rel (%p445) target = $region48
      $region47: #{tpu_custom_call.1} parent=5 // pred_region
        // Predicated region
        $region49: #{tpu_custom_call.1} parent=47 // pred_check
          %p448 = pneg %p60
        $region50: #{tpu_custom_call.1} parent=47 // pred_check_branch
          %450 = sbr.rel (%p448) target = $region52
        $region51: #{tpu_custom_call.1} parent=47 // pred_region
          %s451 = sand.u32 %s50, 1
          %s452 = scalar_lea.sflag [#allocation4], %s451
          %s453 = sand.u32 %s50, 1
          %s454 = smul.addr %s453, 8
          %s455 = scalar_lea.vmem [#allocation3], %s454
          %s457 = ssub.s32 128, 128
          %458 = vsyncadd %s452, %s457
          %s459 = smul.addr %s35, 128
          %s460 = scalar_lea.hbm %s0, %s459
          %s462 = sshll.u32 %s455, 4
          %s463 = int_to_ptr.vmem [resolvable:$true] %s462
          %465 = dma.hbm_to_vmem [thread:$0]  %s460, 128, %s463, %s452
        $region52: #{tpu_custom_call.1} parent=47 // pred_fallthru
          _
        // Predicated region
        $region53: #{tpu_custom_call.1} parent=47 // pred_check
          %p466 = pneg %p86
        $region54: #{tpu_custom_call.1} parent=47 // pred_check_branch
          %468 = sbr.rel (%p466) target = $region56
        $region55: #{tpu_custom_call.1} parent=47 // pred_region
          %s469 = sand.u32 %s28, 1
          %s470 = scalar_lea.sflag [#allocation7], %s469
          %s471 = sand.u32 %s76, 1
          %s472 = smul.addr %s471, 8
          %s473 = scalar_lea.vmem [#allocation6], %s472
          %s475 = ssub.s32 128, 128
          %476 = vsyncadd %s470, %s475
          %s477 = smul.addr %s35, 128
          %s478 = scalar_lea.hbm %s1, %s477
          %s480 = sshll.u32 %s473, 4
          %s481 = int_to_ptr.vmem [resolvable:$true] %s480
          %483 = dma.hbm_to_vmem [thread:$0]  %s478, 128, %s481, %s470
        $region56: #{tpu_custom_call.1} parent=47 // pred_fallthru
          _
        // Predicated region
        $region57: #{tpu_custom_call.1} parent=47 // pred_check
          %p484 = pneg %p112
        $region58: #{tpu_custom_call.1} parent=47 // pred_check_branch
          %486 = sbr.rel (%p484) target = $region60
        $region59: #{tpu_custom_call.1} parent=47 // pred_region
          %s487 = sand.u32 %s28, 1
          %s488 = scalar_lea.sflag [#allocation7], %s487
          %s489 = sand.u32 %s102, 1
          %s490 = smul.addr %s489, 8
          %s491 = scalar_lea.vmem [#allocation8], %s490
          %s493 = ssub.s32 128, 128
          %494 = vsyncadd %s488, %s493
          %s495 = smul.addr %s35, 128
          %s496 = scalar_lea.hbm %s2, %s495
          %s498 = sshll.u32 %s491, 4
          %s499 = int_to_ptr.vmem [resolvable:$true] %s498
          %501 = dma.hbm_to_vmem [thread:$0]  %s496, 128, %s499, %s488
        $region60: #{tpu_custom_call.1} parent=47 // pred_fallthru
          _
      $region48: #{tpu_custom_call.1} parent=5 // pred_fallthru
        _
      %p502 = scmp.le.s32.totalorder 1, %s28
      %p503 = scmp.lt.s32.totalorder %s28, 3
      %p504 = pnand %p502, %p503
      %p505 = pneg %p504
      // Predicated region
      $region61: #{tpu_custom_call.1} parent=5 // pred_check
        _
      $region62: #{tpu_custom_call.1} parent=5 // pred_check_branch
        %507 = sbr.rel (%p504) target = $region64
      $region63: #{tpu_custom_call.1} parent=5 // pred_region
        %s508 = ssub.s32 %s28, 1
        %s509 = sand.u32 %s53, 1
        %s510 = scalar_lea.sflag [#allocation4], %s509
        %s511 = sand.u32 %s53, 1
        %s512 = smul.addr %s511, 8
        %s513 = scalar_lea.vmem [#allocation3], %s512
        // Predicated region
        $region65: #{tpu_custom_call.1} parent=63 // pred_check
          %p514 = pneg %p66
        $region66: #{tpu_custom_call.1} parent=63 // pred_check_branch
          %516 = sbr.rel (%p514) target = $region68
        $region67: #{tpu_custom_call.1} parent=63 // pred_region
          %517 = dma.done %s510, 128
        $region68: #{tpu_custom_call.1} parent=63 // pred_fallthru
          _
        %s518 = sand.u32 %s33, 1
        %s519 = scalar_lea.sflag [#allocation7], %s518
        %s520 = sand.u32 %s79, 1
        %s521 = smul.addr %s520, 8
        %s522 = scalar_lea.vmem [#allocation6], %s521
        // Predicated region
        $region69: #{tpu_custom_call.1} parent=63 // pred_check
          %p523 = pneg %p92
        $region70: #{tpu_custom_call.1} parent=63 // pred_check_branch
          %525 = sbr.rel (%p523) target = $region72
        $region71: #{tpu_custom_call.1} parent=63 // pred_region
          %526 = dma.done %s519, 128
        $region72: #{tpu_custom_call.1} parent=63 // pred_fallthru
          _
        %s527 = sand.u32 %s33, 1
        %s528 = scalar_lea.sflag [#allocation7], %s527
        %s529 = sand.u32 %s105, 1
        %s530 = smul.addr %s529, 8
        %s531 = scalar_lea.vmem [#allocation8], %s530
        // Predicated region
        $region73: #{tpu_custom_call.1} parent=63 // pred_check
          %p532 = pneg %p118
        $region74: #{tpu_custom_call.1} parent=63 // pred_check_branch
          %534 = sbr.rel (%p532) target = $region76
        $region75: #{tpu_custom_call.1} parent=63 // pred_region
          %535 = dma.done %s528, 128
        $region76: #{tpu_custom_call.1} parent=63 // pred_fallthru
          _
        // Predicated region
        $region77: #{tpu_custom_call.1} parent=63 // pred_check
          %p536 = pneg %p144
        $region78: #{tpu_custom_call.1} parent=63 // pred_check_branch
          %538 = sbr.rel (%p536) target = $region80
        $region79: #{tpu_custom_call.1} parent=63 // pred_region
          %539 = dma.done [#allocation10], 256
        $region80: #{tpu_custom_call.1} parent=63 // pred_fallthru
          _
        // Predicated region
        $region81: #{tpu_custom_call.1} parent=63 // pred_check
          %p540 = pneg %p196
        $region82: #{tpu_custom_call.1} parent=63 // pred_check_branch
          %542 = sbr.rel (%p540) target = $region84
        $region83: #{tpu_custom_call.1} parent=63 // pred_region
          %543 = dma.done [#allocation10], 384
        $region84: #{tpu_custom_call.1} parent=63 // pred_fallthru
          _
        // Predicated region
        $region85: #{tpu_custom_call.1} parent=63 // pred_check
          %p544 = pneg %p248
        $region86: #{tpu_custom_call.1} parent=63 // pred_check_branch
          %546 = sbr.rel (%p544) target = $region88
        $region87: #{tpu_custom_call.1} parent=63 // pred_region
          %547 = dma.done [#allocation13], 384
        $region88: #{tpu_custom_call.1} parent=63 // pred_fallthru
          _
        // Predicated region
        $region89: #{tpu_custom_call.1} parent=63 // pred_check
          %p548 = pneg %p274
        $region90: #{tpu_custom_call.1} parent=63 // pred_check_branch
          %550 = sbr.rel (%p548) target = $region92
        $region91: #{tpu_custom_call.1} parent=63 // pred_region
          %551 = dma.done [#allocation13], 16
        $region92: #{tpu_custom_call.1} parent=63 // pred_fallthru
          _
        %s552 = sand.u32 %s53, 1
        %s553 = scalar_lea.sflag [#allocation4], %s552
        %s554 = sand.u32 %s53, 1
        %s555 = smul.addr %s554, 8
        %s556 = scalar_lea.vmem [#allocation3], %s555
        %p557 = pneg %p66
        %p558 = pneg %p63
        %s559 = sand.u32 %s33, 1
        %s560 = scalar_lea.sflag [#allocation7], %s559
        %s561 = sand.u32 %s79, 1
        %s562 = smul.addr %s561, 8
        %s563 = scalar_lea.vmem [#allocation6], %s562
        %p564 = pneg %p92
        %p565 = pneg %p89
        %s566 = sand.u32 %s33, 1
        %s567 = scalar_lea.sflag [#allocation7], %s566
        %s568 = sand.u32 %s105, 1
        %s569 = smul.addr %s568, 8
        %s570 = scalar_lea.vmem [#allocation8], %s569
        %p571 = pneg %p118
        %p572 = pneg %p115
        %p573 = pneg %p144
        %p574 = pneg %p141
        %p575 = scmp.lt.s32.totalorder %s38, 0
        %s576 = scalar_select %p575, %s38, 0
        %s577 = scalar_lea.vmem %s4, %s576
        %p578 = pneg %p170
        %p579 = pneg %p167
        %p580 = pneg %p196
        %p581 = pneg %p193
        %p582 = scmp.lt.s32.totalorder %s38, 0
        %s583 = scalar_select %p582, %s38, 0
        %s584 = scalar_lea.vmem %s6, %s583
        %p585 = pneg %p222
        %p586 = pneg %p219
        %p587 = pneg %p248
        %p588 = pneg %p245
        %p589 = pneg %p274
        %p590 = pneg %p271
        %s591 = smul.u32 4, %s38
        %p592 = scmp.lt.s32.totalorder %s591, 3
        %s593 = scalar_select %p592, %s591, 3
        %s594 = smul.addr %s593, 8
        %s595 = scalar_lea.vmem %s9, %s594
        %p596 = pneg %p300
        %p597 = pneg %p297
        %p598 = pneg %p321
        %p599 = pneg %p318
        %p600 = pneg %p347
        %p601 = pneg %p344
        %s602 = sand.u32 %s334, 1
        %s603 = scalar_lea.sflag [#allocation5], %s602
        %s604 = sand.u32 %s334, 1
        %s605 = smul.addr %s604, 8
        %s606 = scalar_lea.vmem [#allocation15], %s605
        %p607 = scmp.lt.s32.totalorder %s38, 0
        %s608 = scalar_select %p607, %s38, 0
        %s609 = scalar_lea.vmem %s4, %s608
        %p610 = scmp.lt.s32.totalorder %s38, 0
        %s611 = scalar_select %p610, %s38, 0
        %s612 = scalar_lea.vmem %s6, %s611
        %s613 = smul.u32 4, %s38
        %p614 = scmp.lt.s32.totalorder %s613, 3
        %s615 = scalar_select %p614, %s613, 3
        %s616 = smul.addr %s615, 8
        %s617 = scalar_lea.vmem %s9, %s616
        %s618 = smul.u32 4, %s38
        %p619 = scmp.eq.s32.totalorder %s38, 0
        // Predicated region
        $region93: #{tpu_custom_call.1} parent=63 // pred_check
          %p620 = pneg %p619
        $region94: #{tpu_custom_call.1} parent=63 // pred_check_branch
          %622 = sbr.rel (%p620) target = $region96
        $region95: #{tpu_custom_call.1} parent=63 // pred_region
          %vm623 = vcmask 261120
          %624 = vst.msk [vmem:[#allocation2] sm:$0xff] %vm623, 0.0
        $region96: #{tpu_custom_call.1} parent=63 // pred_fallthru
          _
        %v625 = vld [vmem:[%s513] sm:$0xff]
        %v626 = vld [vmem:[#allocation9] sm:$0xff]
        %v627 = vld [vmem:[#allocation9 + $0x8] sm:$0xff]
        %v628 = vld [vmem:[%s609] sm:$0x1]
        %v630 = vlaneseq
        %v631 = vshrl.u32 %v630, 7
        %v632 = vsub.s32 0, %v631
        %v633 = vrot.slane %v628, %v632
        %vm635 = vcmask 130048
        %v637 = vsel %vm635, %v625, 0
        %639 = vmatprep.subr.mxu0 0.0
        %640 = vmatpush1.msra.mxu0 %v626
        %641 = vmatprep.subr.mxu0 0.0
        %642 = vmatpush1.msra.mxu0 %v627
        %643 = vmatprep.subr.mxu0 0.0
        %644 = vmatpush1.msra.mxu0 0.0
        %645 = vmatprep.subr.mxu0 0.0
        %646 = vmatpush1.msra.mxu0 0.0
        %647 = vmatprep.subr.mxu0 0.0
        %648 = vmatpush1.msra.mxu0 0.0
        %649 = vmatprep.subr.mxu0 0.0
        %650 = vmatpush1.msra.mxu0 0.0
        %651 = vmatprep.subr.mxu0 0.0
        %652 = vmatpush1.msra.mxu0 0.0
        %653 = vmatprep.subr.mxu0 0.0
        %654 = vmatpush1.msra.mxu0 0.0
        %655 = vmatprep.subr.mxu0 0.0
        %656 = vmatpush1.msra.mxu0 0.0
        %657 = vmatprep.subr.mxu0 0.0
        %658 = vmatpush1.msra.mxu0 0.0
        %659 = vmatprep.subr.mxu0 0.0
        %660 = vmatpush1.msra.mxu0 0.0
        %661 = vmatprep.subr.mxu0 0.0
        %662 = vmatpush1.msra.mxu0 0.0
        %663 = vmatprep.subr.mxu0 0.0
        %664 = vmatpush1.msra.mxu0 0.0
        %665 = vmatprep.subr.mxu0 0.0
        %666 = vmatpush1.msra.mxu0 0.0
        %667 = vmatprep.subr.mxu0 0.0
        %668 = vmatpush1.msra.mxu0 0.0
        %669 = vmatprep.subr.mxu0 0.0
        %670 = vmatpush1.msra.mxu0 0.0
        %671 = vmatprep.subr.mxu0 0.0
        %672 = vmatpush1.msra.mxu0 0.0
        %673 = vmatprep.subr.mxu0 0.0
        %674 = vmatpush1.msra.mxu0 0.0
        %675 = vmatprep.subr.mxu0 0.0
        %676 = vmatpush1.msra.mxu0 0.0
        %677 = vmatprep.subr.mxu0 0.0
        %678 = vmatpush1.msra.mxu0 0.0
        %679 = vmatprep.subr.mxu0 0.0
        %680 = vmatpush1.msra.mxu0 0.0
        %681 = vmatprep.subr.mxu0 0.0
        %682 = vmatpush1.msra.mxu0 0.0
        %683 = vmatprep.subr.mxu0 0.0
        %684 = vmatpush1.msra.mxu0 0.0
        %685 = vmatprep.subr.mxu0 0.0
        %686 = vmatpush1.msra.mxu0 0.0
        %687 = vmatprep.subr.mxu0 0.0
        %688 = vmatpush1.msra.mxu0 0.0
        %689 = vmatprep.subr.mxu0 0.0
        %690 = vmatpush1.msra.mxu0 0.0
        %691 = vmatprep.subr.mxu0 0.0
        %692 = vmatpush1.msra.mxu0 0.0
        %693 = vmatprep.subr.mxu0 0.0
        %694 = vmatpush1.msra.mxu0 0.0
        %695 = vmatprep.subr.mxu0 0.0
        %696 = vmatpush1.msra.mxu0 0.0
        %697 = vmatprep.subr.mxu0 0.0
        %698 = vmatpush1.msra.mxu0 0.0
        %699 = vmatprep.subr.mxu0 0.0
        %700 = vmatpush1.msra.mxu0 0.0
        %701 = vmatprep.subr.mxu0 0.0
        %702 = vmatpush1.msra.mxu0 0.0
        %703 = vmatprep.mubr.f32.mxu0 0.0
        %704 = vmatmul.mubr.f32.gmra.mrb[0].mxu0 %v637
        %v705 = vpop.f32.mrb[0].mxu0
        %v706 = vadd.f32 %v633, %v705
        %v707 = vpop.f32.mrb[0].mxu0
        %708 = vdwg.mxu0
        %v709 = vld [vmem:[%s522] sm:$0xff]
        %v710 = vld [vmem:[#allocation11] sm:$0xff]
        %v711 = vld [vmem:[#allocation11 + $0x8] sm:$0xff]
        %v712 = vld [vmem:[#allocation11 + $0x10] sm:$0xff]
        %v713 = vld [vmem:[%s612] sm:$0x1]
        %v715 = vlaneseq
        %v716 = vshrl.u32 %v715, 7
        %v717 = vsub.s32 0, %v716
        %v718 = vrot.slane %v713, %v717
        %vm720 = vcmask 195584
        %v722 = vsel %vm720, %v709, 0
        %724 = vmatprep.subr.mxu0 0.0
        %725 = vmatpush1.msra.mxu0 %v710
        %726 = vmatprep.subr.mxu0 0.0
        %727 = vmatpush1.msra.mxu0 %v711
        %728 = vmatprep.subr.mxu0 0.0
        %729 = vmatpush1.msra.mxu0 %v712
        %730 = vmatprep.subr.mxu0 0.0
        %731 = vmatpush1.msra.mxu0 0.0
        %732 = vmatprep.subr.mxu0 0.0
        %733 = vmatpush1.msra.mxu0 0.0
        %734 = vmatprep.subr.mxu0 0.0
        %735 = vmatpush1.msra.mxu0 0.0
        %736 = vmatprep.subr.mxu0 0.0
        %737 = vmatpush1.msra.mxu0 0.0
        %738 = vmatprep.subr.mxu0 0.0
        %739 = vmatpush1.msra.mxu0 0.0
        %740 = vmatprep.subr.mxu0 0.0
        %741 = vmatpush1.msra.mxu0 0.0
        %742 = vmatprep.subr.mxu0 0.0
        %743 = vmatpush1.msra.mxu0 0.0
        %744 = vmatprep.subr.mxu0 0.0
        %745 = vmatpush1.msra.mxu0 0.0
        %746 = vmatprep.subr.mxu0 0.0
        %747 = vmatpush1.msra.mxu0 0.0
        %748 = vmatprep.subr.mxu0 0.0
        %749 = vmatpush1.msra.mxu0 0.0
        %750 = vmatprep.subr.mxu0 0.0
        %751 = vmatpush1.msra.mxu0 0.0
        %752 = vmatprep.subr.mxu0 0.0
        %753 = vmatpush1.msra.mxu0 0.0
        %754 = vmatprep.subr.mxu0 0.0
        %755 = vmatpush1.msra.mxu0 0.0
        %756 = vmatprep.subr.mxu0 0.0
        %757 = vmatpush1.msra.mxu0 0.0
        %758 = vmatprep.subr.mxu0 0.0
        %759 = vmatpush1.msra.mxu0 0.0
        %760 = vmatprep.subr.mxu0 0.0
        %761 = vmatpush1.msra.mxu0 0.0
        %762 = vmatprep.subr.mxu0 0.0
        %763 = vmatpush1.msra.mxu0 0.0
        %764 = vmatprep.subr.mxu0 0.0
        %765 = vmatpush1.msra.mxu0 0.0
        %766 = vmatprep.subr.mxu0 0.0
        %767 = vmatpush1.msra.mxu0 0.0
        %768 = vmatprep.subr.mxu0 0.0
        %769 = vmatpush1.msra.mxu0 0.0
        %770 = vmatprep.subr.mxu0 0.0
        %771 = vmatpush1.msra.mxu0 0.0
        %772 = vmatprep.subr.mxu0 0.0
        %773 = vmatpush1.msra.mxu0 0.0
        %774 = vmatprep.subr.mxu0 0.0
        %775 = vmatpush1.msra.mxu0 0.0
        %776 = vmatprep.subr.mxu0 0.0
        %777 = vmatpush1.msra.mxu0 0.0
        %778 = vmatprep.subr.mxu0 0.0
        %779 = vmatpush1.msra.mxu0 0.0
        %780 = vmatprep.subr.mxu0 0.0
        %781 = vmatpush1.msra.mxu0 0.0
        %782 = vmatprep.subr.mxu0 0.0
        %783 = vmatpush1.msra.mxu0 0.0
        %784 = vmatprep.subr.mxu0 0.0
        %785 = vmatpush1.msra.mxu0 0.0
        %786 = vmatprep.subr.mxu0 0.0
        %787 = vmatpush1.msra.mxu0 0.0
        %788 = vmatprep.mubr.f32.mxu0 0.0
        %789 = vmatmul.mubr.f32.gmra.mrb[0].mxu0 %v722
        %v790 = vpop.f32.mrb[0].mxu0
        %v791 = vadd.f32 %v718, %v790
        %v792 = vpop.f32.mrb[0].mxu0
        %793 = vdwg.mxu0
        %v794 = vld [vmem:[%s531] sm:$0xff]
        %v795 = vld [vmem:[#allocation12] sm:$0xff]
        %v796 = vld [vmem:[#allocation12 + $0x8] sm:$0xff]
        %v797 = vld [vmem:[#allocation12 + $0x10] sm:$0xff]
        %v798 = vld [vmem:[#allocation14] sm:$0x1]
        %v800 = vlaneseq
        %v801 = vshrl.u32 %v800, 7
        %v802 = vsub.s32 0, %v801
        %v803 = vrot.slane %v798, %v802
        %v806 = vsel %vm720, %v794, 0
        %808 = vmatprep.subr.mxu0 0.0
        %809 = vmatpush1.msra.mxu0 %v795
        %810 = vmatprep.subr.mxu0 0.0
        %811 = vmatpush1.msra.mxu0 %v796
        %812 = vmatprep.subr.mxu0 0.0
        %813 = vmatpush1.msra.mxu0 %v797
        %814 = vmatprep.subr.mxu0 0.0
        %815 = vmatpush1.msra.mxu0 0.0
        %816 = vmatprep.subr.mxu0 0.0
        %817 = vmatpush1.msra.mxu0 0.0
        %818 = vmatprep.subr.mxu0 0.0
        %819 = vmatpush1.msra.mxu0 0.0
        %820 = vmatprep.subr.mxu0 0.0
        %821 = vmatpush1.msra.mxu0 0.0
        %822 = vmatprep.subr.mxu0 0.0
        %823 = vmatpush1.msra.mxu0 0.0
        %824 = vmatprep.subr.mxu0 0.0
        %825 = vmatpush1.msra.mxu0 0.0
        %826 = vmatprep.subr.mxu0 0.0
        %827 = vmatpush1.msra.mxu0 0.0
        %828 = vmatprep.subr.mxu0 0.0
        %829 = vmatpush1.msra.mxu0 0.0
        %830 = vmatprep.subr.mxu0 0.0
        %831 = vmatpush1.msra.mxu0 0.0
        %832 = vmatprep.subr.mxu0 0.0
        %833 = vmatpush1.msra.mxu0 0.0
        %834 = vmatprep.subr.mxu0 0.0
        %835 = vmatpush1.msra.mxu0 0.0
        %836 = vmatprep.subr.mxu0 0.0
        %837 = vmatpush1.msra.mxu0 0.0
        %838 = vmatprep.subr.mxu0 0.0
        %839 = vmatpush1.msra.mxu0 0.0
        %840 = vmatprep.subr.mxu0 0.0
        %841 = vmatpush1.msra.mxu0 0.0
        %842 = vmatprep.subr.mxu0 0.0
        %843 = vmatpush1.msra.mxu0 0.0
        %844 = vmatprep.subr.mxu0 0.0
        %845 = vmatpush1.msra.mxu0 0.0
        %846 = vmatprep.subr.mxu0 0.0
        %847 = vmatpush1.msra.mxu0 0.0
        %848 = vmatprep.subr.mxu0 0.0
        %849 = vmatpush1.msra.mxu0 0.0
        %850 = vmatprep.subr.mxu0 0.0
        %851 = vmatpush1.msra.mxu0 0.0
        %852 = vmatprep.subr.mxu0 0.0
        %853 = vmatpush1.msra.mxu0 0.0
        %854 = vmatprep.subr.mxu0 0.0
        %855 = vmatpush1.msra.mxu0 0.0
        %856 = vmatprep.subr.mxu0 0.0
        %857 = vmatpush1.msra.mxu0 0.0
        %858 = vmatprep.subr.mxu0 0.0
        %859 = vmatpush1.msra.mxu0 0.0
        %860 = vmatprep.subr.mxu0 0.0
        %861 = vmatpush1.msra.mxu0 0.0
        %862 = vmatprep.subr.mxu0 0.0
        %863 = vmatpush1.msra.mxu0 0.0
        %864 = vmatprep.subr.mxu0 0.0
        %865 = vmatpush1.msra.mxu0 0.0
        %866 = vmatprep.subr.mxu0 0.0
        %867 = vmatpush1.msra.mxu0 0.0
        %868 = vmatprep.subr.mxu0 0.0
        %869 = vmatpush1.msra.mxu0 0.0
        %870 = vmatprep.subr.mxu0 0.0
        %871 = vmatpush1.msra.mxu0 0.0
        %872 = vmatprep.mubr.f32.mxu0 0.0
        %873 = vmatmul.mubr.f32.gmra.mrb[0].mxu0 %v806
        %v874 = vpop.f32.mrb[0].mxu0
        %v875 = vadd.f32 %v803, %v874
        %v876 = vpop.f32.mrb[0].mxu0
        %877 = vdwg.mxu0
        %vm878 = vcmask 64512
        %v880 = vsel %vm878, %v706, 0
        %v883 = vsel %vm878, %v791, 0
        %885 = vmatprep.subr.mxu0 0.0
        %886 = vmatpush1.xpose.msra.mxu0 %v883
        %887 = vmatprep.subr.mxu0 0.0
        %888 = vmatpush1.xpose.msra.mxu0 0.0
        %889 = vmatprep.subr.mxu0 0.0
        %890 = vmatpush1.xpose.msra.mxu0 0.0
        %891 = vmatprep.subr.mxu0 0.0
        %892 = vmatpush1.xpose.msra.mxu0 0.0
        %893 = vmatprep.subr.mxu0 0.0
        %894 = vmatpush1.xpose.msra.mxu0 0.0
        %895 = vmatprep.subr.mxu0 0.0
        %896 = vmatpush1.xpose.msra.mxu0 0.0
        %897 = vmatprep.subr.mxu0 0.0
        %898 = vmatpush1.xpose.msra.mxu0 0.0
        %899 = vmatprep.subr.mxu0 0.0
        %900 = vmatpush1.xpose.msra.mxu0 0.0
        %901 = vmatprep.subr.mxu0 0.0
        %902 = vmatpush1.xpose.msra.mxu0 0.0
        %903 = vmatprep.subr.mxu0 0.0
        %904 = vmatpush1.xpose.msra.mxu0 0.0
        %905 = vmatprep.subr.mxu0 0.0
        %906 = vmatpush1.xpose.msra.mxu0 0.0
        %907 = vmatprep.subr.mxu0 0.0
        %908 = vmatpush1.xpose.msra.mxu0 0.0
        %909 = vmatprep.subr.mxu0 0.0
        %910 = vmatpush1.xpose.msra.mxu0 0.0
        %911 = vmatprep.subr.mxu0 0.0
        %912 = vmatpush1.xpose.msra.mxu0 0.0
        %913 = vmatprep.subr.mxu0 0.0
        %914 = vmatpush1.xpose.msra.mxu0 0.0
        %915 = vmatprep.subr.mxu0 0.0
        %916 = vmatpush1.xpose.msra.mxu0 0.0
        %917 = vmatprep.subr.mxu0 0.0
        %918 = vmatpush1.xpose.msra.mxu0 0.0
        %919 = vmatprep.subr.mxu0 0.0
        %920 = vmatpush1.xpose.msra.mxu0 0.0
        %921 = vmatprep.subr.mxu0 0.0
        %922 = vmatpush1.xpose.msra.mxu0 0.0
        %923 = vmatprep.subr.mxu0 0.0
        %924 = vmatpush1.xpose.msra.mxu0 0.0
        %925 = vmatprep.subr.mxu0 0.0
        %926 = vmatpush1.xpose.msra.mxu0 0.0
        %927 = vmatprep.subr.mxu0 0.0
        %928 = vmatpush1.xpose.msra.mxu0 0.0
        %929 = vmatprep.subr.mxu0 0.0
        %930 = vmatpush1.xpose.msra.mxu0 0.0
        %931 = vmatprep.subr.mxu0 0.0
        %932 = vmatpush1.xpose.msra.mxu0 0.0
        %933 = vmatprep.subr.mxu0 0.0
        %934 = vmatpush1.xpose.msra.mxu0 0.0
        %935 = vmatprep.subr.mxu0 0.0
        %936 = vmatpush1.xpose.msra.mxu0 0.0
        %937 = vmatprep.subr.mxu0 0.0
        %938 = vmatpush1.xpose.msra.mxu0 0.0
        %939 = vmatprep.subr.mxu0 0.0
        %940 = vmatpush1.xpose.msra.mxu0 0.0
        %941 = vmatprep.subr.mxu0 0.0
        %942 = vmatpush1.xpose.msra.mxu0 0.0
        %943 = vmatprep.subr.mxu0 0.0
        %944 = vmatpush1.xpose.msra.mxu0 0.0
        %945 = vmatprep.subr.mxu0 0.0
        %946 = vmatpush1.xpose.msra.mxu0 0.0
        %947 = vmatprep.subr.mxu0 0.0
        %948 = vmatpush1.xpose.msra.mxu0 0.0
        %949 = vmatprep.mubr.f32.mxu0 0.0
        %950 = vmatmul.mubr.f32.gmra.mrb[0].mxu0 %v880
        %v951 = vpop.f32.mrb[0].mxu0
        %v952 = vadd.f32 0.0, %v951
        %v953 = vpop.f32.mrb[0].mxu0
        %954 = vdwg.mxu0
        %v955 = vsel %vm878, %v952, -inf
        %956 = vmax.xlane.f32.xlu0 %v955
        %v957 = vpop.xlane.xlu0 %956
        %v958 = vsub.f32 %v952, %v957
        %v959 = vmul.f32 %v958, 1.442695
        %v960 = vpow.pop %v959
        %v961 = vsel %vm878, %v960, 0.0
        %962 = vadd.xlane.f32.xlu0 %v961
        %v963 = vpop.xlane.xlu0 %962
        %v964 = vrcp.pop %v963
        %v965 = vmul.f32 %v960, %v964
        %v967 = vsel %vm878, %v965, 0
        %969 = vmatprep.subr.mxu0 0.0
        %970 = vmatpush1.msra.mxu0 %v875
        %971 = vmatprep.subr.mxu0 0.0
        %972 = vmatpush1.msra.mxu0 0.0
        %973 = vmatprep.subr.mxu0 0.0
        %974 = vmatpush1.msra.mxu0 0.0
        %975 = vmatprep.subr.mxu0 0.0
        %976 = vmatpush1.msra.mxu0 0.0
        %977 = vmatprep.subr.mxu0 0.0
        %978 = vmatpush1.msra.mxu0 0.0
        %979 = vmatprep.subr.mxu0 0.0
        %980 = vmatpush1.msra.mxu0 0.0
        %981 = vmatprep.subr.mxu0 0.0
        %982 = vmatpush1.msra.mxu0 0.0
        %983 = vmatprep.subr.mxu0 0.0
        %984 = vmatpush1.msra.mxu0 0.0
        %985 = vmatprep.subr.mxu0 0.0
        %986 = vmatpush1.msra.mxu0 0.0
        %987 = vmatprep.subr.mxu0 0.0
        %988 = vmatpush1.msra.mxu0 0.0
        %989 = vmatprep.subr.mxu0 0.0
        %990 = vmatpush1.msra.mxu0 0.0
        %991 = vmatprep.subr.mxu0 0.0
        %992 = vmatpush1.msra.mxu0 0.0
        %993 = vmatprep.subr.mxu0 0.0
        %994 = vmatpush1.msra.mxu0 0.0
        %995 = vmatprep.subr.mxu0 0.0
        %996 = vmatpush1.msra.mxu0 0.0
        %997 = vmatprep.subr.mxu0 0.0
        %998 = vmatpush1.msra.mxu0 0.0
        %999 = vmatprep.subr.mxu0 0.0
        %1000 = vmatpush1.msra.mxu0 0.0
        %1001 = vmatprep.subr.mxu0 0.0
        %1002 = vmatpush1.msra.mxu0 0.0
        %1003 = vmatprep.subr.mxu0 0.0
        %1004 = vmatpush1.msra.mxu0 0.0
        %1005 = vmatprep.subr.mxu0 0.0
        %1006 = vmatpush1.msra.mxu0 0.0
        %1007 = vmatprep.subr.mxu0 0.0
        %1008 = vmatpush1.msra.mxu0 0.0
        %1009 = vmatprep.subr.mxu0 0.0
        %1010 = vmatpush1.msra.mxu0 0.0
        %1011 = vmatprep.subr.mxu0 0.0
        %1012 = vmatpush1.msra.mxu0 0.0
        %1013 = vmatprep.subr.mxu0 0.0
        %1014 = vmatpush1.msra.mxu0 0.0
        %1015 = vmatprep.subr.mxu0 0.0
        %1016 = vmatpush1.msra.mxu0 0.0
        %1017 = vmatprep.subr.mxu0 0.0
        %1018 = vmatpush1.msra.mxu0 0.0
        %1019 = vmatprep.subr.mxu0 0.0
        %1020 = vmatpush1.msra.mxu0 0.0
        %1021 = vmatprep.subr.mxu0 0.0
        %1022 = vmatpush1.msra.mxu0 0.0
        %1023 = vmatprep.subr.mxu0 0.0
        %1024 = vmatpush1.msra.mxu0 0.0
        %1025 = vmatprep.subr.mxu0 0.0
        %1026 = vmatpush1.msra.mxu0 0.0
        %1027 = vmatprep.subr.mxu0 0.0
        %1028 = vmatpush1.msra.mxu0 0.0
        %1029 = vmatprep.subr.mxu0 0.0
        %1030 = vmatpush1.msra.mxu0 0.0
        %1031 = vmatprep.subr.mxu0 0.0
        %1032 = vmatpush1.msra.mxu0 0.0
        %1033 = vmatprep.mubr.f32.mxu0 0.0
        %1034 = vmatmul.mubr.f32.gmra.mrb[0].mxu0 %v967
        %v1035 = vpop.f32.mrb[0].mxu0
        %v1036 = vadd.f32 0.0, %v1035
        %v1037 = vpop.f32.mrb[0].mxu0
        %1038 = vdwg.mxu0
        %v1039 = vld [vmem:[%s617] sm:$0xff]
        %v1040 = vld [vmem:[#allocation2] sm:$0xff]
        %v1042 = vsel %vm878, %v1036, 0
        %1044 = vmatprep.subr.mxu0 0.0
        %1045 = vmatpush1.msra.mxu0 %v1039
        %1046 = vmatprep.subr.mxu0 0.0
        %1047 = vmatpush1.msra.mxu0 0.0
        %1048 = vmatprep.subr.mxu0 0.0
        %1049 = vmatpush1.msra.mxu0 0.0
        %1050 = vmatprep.subr.mxu0 0.0
        %1051 = vmatpush1.msra.mxu0 0.0
        %1052 = vmatprep.subr.mxu0 0.0
        %1053 = vmatpush1.msra.mxu0 0.0
        %1054 = vmatprep.subr.mxu0 0.0
        %1055 = vmatpush1.msra.mxu0 0.0
        %1056 = vmatprep.subr.mxu0 0.0
        %1057 = vmatpush1.msra.mxu0 0.0
        %1058 = vmatprep.subr.mxu0 0.0
        %1059 = vmatpush1.msra.mxu0 0.0
        %1060 = vmatprep.subr.mxu0 0.0
        %1061 = vmatpush1.msra.mxu0 0.0
        %1062 = vmatprep.subr.mxu0 0.0
        %1063 = vmatpush1.msra.mxu0 0.0
        %1064 = vmatprep.subr.mxu0 0.0
        %1065 = vmatpush1.msra.mxu0 0.0
        %1066 = vmatprep.subr.mxu0 0.0
        %1067 = vmatpush1.msra.mxu0 0.0
        %1068 = vmatprep.subr.mxu0 0.0
        %1069 = vmatpush1.msra.mxu0 0.0
        %1070 = vmatprep.subr.mxu0 0.0
        %1071 = vmatpush1.msra.mxu0 0.0
        %1072 = vmatprep.subr.mxu0 0.0
        %1073 = vmatpush1.msra.mxu0 0.0
        %1074 = vmatprep.subr.mxu0 0.0
        %1075 = vmatpush1.msra.mxu0 0.0
        %1076 = vmatprep.subr.mxu0 0.0
        %1077 = vmatpush1.msra.mxu0 0.0
        %1078 = vmatprep.subr.mxu0 0.0
        %1079 = vmatpush1.msra.mxu0 0.0
        %1080 = vmatprep.subr.mxu0 0.0
        %1081 = vmatpush1.msra.mxu0 0.0
        %1082 = vmatprep.subr.mxu0 0.0
        %1083 = vmatpush1.msra.mxu0 0.0
        %1084 = vmatprep.subr.mxu0 0.0
        %1085 = vmatpush1.msra.mxu0 0.0
        %1086 = vmatprep.subr.mxu0 0.0
        %1087 = vmatpush1.msra.mxu0 0.0
        %1088 = vmatprep.subr.mxu0 0.0
        %1089 = vmatpush1.msra.mxu0 0.0
        %1090 = vmatprep.subr.mxu0 0.0
        %1091 = vmatpush1.msra.mxu0 0.0
        %1092 = vmatprep.subr.mxu0 0.0
        %1093 = vmatpush1.msra.mxu0 0.0
        %1094 = vmatprep.subr.mxu0 0.0
        %1095 = vmatpush1.msra.mxu0 0.0
        %1096 = vmatprep.subr.mxu0 0.0
        %1097 = vmatpush1.msra.mxu0 0.0
        %1098 = vmatprep.subr.mxu0 0.0
        %1099 = vmatpush1.msra.mxu0 0.0
        %1100 = vmatprep.subr.mxu0 0.0
        %1101 = vmatpush1.msra.mxu0 0.0
        %1102 = vmatprep.subr.mxu0 0.0
        %1103 = vmatpush1.msra.mxu0 0.0
        %1104 = vmatprep.subr.mxu0 0.0
        %1105 = vmatpush1.msra.mxu0 0.0
        %1106 = vmatprep.subr.mxu0 0.0
        %1107 = vmatpush1.msra.mxu0 0.0
        %1108 = vmatprep.mubr.f32.mxu0 0.0
        %1109 = vmatmul.mubr.f32.gmra.mrb[0].mxu0 %v1042
        %v1110 = vpop.f32.mrb[0].mxu0
        %v1111 = vadd.f32 0.0, %v1110
        %v1112 = vpop.f32.mrb[0].mxu0
        %1113 = vdwg.mxu0
        %v1114 = vadd.f32 %v1040, %v1111
        %vm1115 = vcmask 261120
        %1116 = vst.msk [vmem:[#allocation2] sm:$0xff] %vm1115, %v1114
        %1117 = vrot.lane.b32.xlu0 %v706, 120
        %v1118 = vpop.permute.xlu0 %1117
        %1119 = vrot.lane.b32.xlu0 %v791, 120
        %v1120 = vpop.permute.xlu0 %1119
        %v1121 = vsel %vm878, %v1118, 0
        %v1123 = vsel %vm878, %v1120, 0
        %1125 = vmatprep.subr.mxu0 0.0
        %1126 = vmatpush1.xpose.msra.mxu0 %v1123
        %1127 = vmatprep.subr.mxu0 0.0
        %1128 = vmatpush1.xpose.msra.mxu0 0.0
        %1129 = vmatprep.subr.mxu0 0.0
        %1130 = vmatpush1.xpose.msra.mxu0 0.0
        %1131 = vmatprep.subr.mxu0 0.0
        %1132 = vmatpush1.xpose.msra.mxu0 0.0
        %1133 = vmatprep.subr.mxu0 0.0
        %1134 = vmatpush1.xpose.msra.mxu0 0.0
        %1135 = vmatprep.subr.mxu0 0.0
        %1136 = vmatpush1.xpose.msra.mxu0 0.0
        %1137 = vmatprep.subr.mxu0 0.0
        %1138 = vmatpush1.xpose.msra.mxu0 0.0
        %1139 = vmatprep.subr.mxu0 0.0
        %1140 = vmatpush1.xpose.msra.mxu0 0.0
        %1141 = vmatprep.subr.mxu0 0.0
        %1142 = vmatpush1.xpose.msra.mxu0 0.0
        %1143 = vmatprep.subr.mxu0 0.0
        %1144 = vmatpush1.xpose.msra.mxu0 0.0
        %1145 = vmatprep.subr.mxu0 0.0
        %1146 = vmatpush1.xpose.msra.mxu0 0.0
        %1147 = vmatprep.subr.mxu0 0.0
        %1148 = vmatpush1.xpose.msra.mxu0 0.0
        %1149 = vmatprep.subr.mxu0 0.0
        %1150 = vmatpush1.xpose.msra.mxu0 0.0
        %1151 = vmatprep.subr.mxu0 0.0
        %1152 = vmatpush1.xpose.msra.mxu0 0.0
        %1153 = vmatprep.subr.mxu0 0.0
        %1154 = vmatpush1.xpose.msra.mxu0 0.0
        %1155 = vmatprep.subr.mxu0 0.0
        %1156 = vmatpush1.xpose.msra.mxu0 0.0
        %1157 = vmatprep.subr.mxu0 0.0
        %1158 = vmatpush1.xpose.msra.mxu0 0.0
        %1159 = vmatprep.subr.mxu0 0.0
        %1160 = vmatpush1.xpose.msra.mxu0 0.0
        %1161 = vmatprep.subr.mxu0 0.0
        %1162 = vmatpush1.xpose.msra.mxu0 0.0
        %1163 = vmatprep.subr.mxu0 0.0
        %1164 = vmatpush1.xpose.msra.mxu0 0.0
        %1165 = vmatprep.subr.mxu0 0.0
        %1166 = vmatpush1.xpose.msra.mxu0 0.0
        %1167 = vmatprep.subr.mxu0 0.0
        %1168 = vmatpush1.xpose.msra.mxu0 0.0
        %1169 = vmatprep.subr.mxu0 0.0
        %1170 = vmatpush1.xpose.msra.mxu0 0.0
        %1171 = vmatprep.subr.mxu0 0.0
        %1172 = vmatpush1.xpose.msra.mxu0 0.0
        %1173 = vmatprep.subr.mxu0 0.0
        %1174 = vmatpush1.xpose.msra.mxu0 0.0
        %1175 = vmatprep.subr.mxu0 0.0
        %1176 = vmatpush1.xpose.msra.mxu0 0.0
        %1177 = vmatprep.subr.mxu0 0.0
        %1178 = vmatpush1.xpose.msra.mxu0 0.0
        %1179 = vmatprep.subr.mxu0 0.0
        %1180 = vmatpush1.xpose.msra.mxu0 0.0
        %1181 = vmatprep.subr.mxu0 0.0
        %1182 = vmatpush1.xpose.msra.mxu0 0.0
        %1183 = vmatprep.subr.mxu0 0.0
        %1184 = vmatpush1.xpose.msra.mxu0 0.0
        %1185 = vmatprep.subr.mxu0 0.0
        %1186 = vmatpush1.xpose.msra.mxu0 0.0
        %1187 = vmatprep.subr.mxu0 0.0
        %1188 = vmatpush1.xpose.msra.mxu0 0.0
        %1189 = vmatprep.mubr.f32.mxu0 0.0
        %1190 = vmatmul.mubr.f32.gmra.mrb[0].mxu0 %v1121
        %v1191 = vpop.f32.mrb[0].mxu0
        %v1192 = vadd.f32 0.0, %v1191
        %v1193 = vpop.f32.mrb[0].mxu0
        %1194 = vdwg.mxu0
        %v1195 = vsel %vm878, %v1192, -inf
        %1196 = vmax.xlane.f32.xlu0 %v1195
        %v1197 = vpop.xlane.xlu0 %1196
        %v1198 = vsub.f32 %v1192, %v1197
        %v1199 = vmul.f32 %v1198, 1.442695
        %v1200 = vpow.pop %v1199
        %v1201 = vsel %vm878, %v1200, 0.0
        %1202 = vadd.xlane.f32.xlu0 %v1201
        %v1203 = vpop.xlane.xlu0 %1202
        %v1204 = vrcp.pop %v1203
        %v1205 = vmul.f32 %v1200, %v1204
        %1207 = vrot.lane.b32.xlu0 %v875, 120
        %v1208 = vpop.permute.xlu0 %1207
        %v1211 = vsel %vm878, %v1205, 0
        %1213 = vmatprep.subr.mxu0 0.0
        %1214 = vmatpush1.msra.mxu0 %v1208
        %1215 = vmatprep.subr.mxu0 0.0
        %1216 = vmatpush1.msra.mxu0 0.0
        %1217 = vmatprep.subr.mxu0 0.0
        %1218 = vmatpush1.msra.mxu0 0.0
        %1219 = vmatprep.subr.mxu0 0.0
        %1220 = vmatpush1.msra.mxu0 0.0
        %1221 = vmatprep.subr.mxu0 0.0
        %1222 = vmatpush1.msra.mxu0 0.0
        %1223 = vmatprep.subr.mxu0 0.0
        %1224 = vmatpush1.msra.mxu0 0.0
        %1225 = vmatprep.subr.mxu0 0.0
        %1226 = vmatpush1.msra.mxu0 0.0
        %1227 = vmatprep.subr.mxu0 0.0
        %1228 = vmatpush1.msra.mxu0 0.0
        %1229 = vmatprep.subr.mxu0 0.0
        %1230 = vmatpush1.msra.mxu0 0.0
        %1231 = vmatprep.subr.mxu0 0.0
        %1232 = vmatpush1.msra.mxu0 0.0
        %1233 = vmatprep.subr.mxu0 0.0
        %1234 = vmatpush1.msra.mxu0 0.0
        %1235 = vmatprep.subr.mxu0 0.0
        %1236 = vmatpush1.msra.mxu0 0.0
        %1237 = vmatprep.subr.mxu0 0.0
        %1238 = vmatpush1.msra.mxu0 0.0
        %1239 = vmatprep.subr.mxu0 0.0
        %1240 = vmatpush1.msra.mxu0 0.0
        %1241 = vmatprep.subr.mxu0 0.0
        %1242 = vmatpush1.msra.mxu0 0.0
        %1243 = vmatprep.subr.mxu0 0.0
        %1244 = vmatpush1.msra.mxu0 0.0
        %1245 = vmatprep.subr.mxu0 0.0
        %1246 = vmatpush1.msra.mxu0 0.0
        %1247 = vmatprep.subr.mxu0 0.0
        %1248 = vmatpush1.msra.mxu0 0.0
        %1249 = vmatprep.subr.mxu0 0.0
        %1250 = vmatpush1.msra.mxu0 0.0
        %1251 = vmatprep.subr.mxu0 0.0
        %1252 = vmatpush1.msra.mxu0 0.0
        %1253 = vmatprep.subr.mxu0 0.0
        %1254 = vmatpush1.msra.mxu0 0.0
        %1255 = vmatprep.subr.mxu0 0.0
        %1256 = vmatpush1.msra.mxu0 0.0
        %1257 = vmatprep.subr.mxu0 0.0
        %1258 = vmatpush1.msra.mxu0 0.0
        %1259 = vmatprep.subr.mxu0 0.0
        %1260 = vmatpush1.msra.mxu0 0.0
        %1261 = vmatprep.subr.mxu0 0.0
        %1262 = vmatpush1.msra.mxu0 0.0
        %1263 = vmatprep.subr.mxu0 0.0
        %1264 = vmatpush1.msra.mxu0 0.0
        %1265 = vmatprep.subr.mxu0 0.0
        %1266 = vmatpush1.msra.mxu0 0.0
        %1267 = vmatprep.subr.mxu0 0.0
        %1268 = vmatpush1.msra.mxu0 0.0
        %1269 = vmatprep.subr.mxu0 0.0
        %1270 = vmatpush1.msra.mxu0 0.0
        %1271 = vmatprep.subr.mxu0 0.0
        %1272 = vmatpush1.msra.mxu0 0.0
        %1273 = vmatprep.subr.mxu0 0.0
        %1274 = vmatpush1.msra.mxu0 0.0
        %1275 = vmatprep.subr.mxu0 0.0
        %1276 = vmatpush1.msra.mxu0 0.0
        %1277 = vmatprep.mubr.f32.mxu0 0.0
        %1278 = vmatmul.mubr.f32.gmra.mrb[0].mxu0 %v1211
        %v1279 = vpop.f32.mrb[0].mxu0
        %v1280 = vadd.f32 0.0, %v1279
        %v1281 = vpop.f32.mrb[0].mxu0
        %1282 = vdwg.mxu0
        %v1283 = vld [vmem:[%s617 + $0x8] sm:$0xff]
        %v1284 = vld [vmem:[#allocation2] sm:$0xff]
        %v1286 = vsel %vm878, %v1280, 0
        %1288 = vmatprep.subr.mxu0 0.0
        %1289 = vmatpush1.msra.mxu0 %v1283
        %1290 = vmatprep.subr.mxu0 0.0
        %1291 = vmatpush1.msra.mxu0 0.0
        %1292 = vmatprep.subr.mxu0 0.0
        %1293 = vmatpush1.msra.mxu0 0.0
        %1294 = vmatprep.subr.mxu0 0.0
        %1295 = vmatpush1.msra.mxu0 0.0
        %1296 = vmatprep.subr.mxu0 0.0
        %1297 = vmatpush1.msra.mxu0 0.0
        %1298 = vmatprep.subr.mxu0 0.0
        %1299 = vmatpush1.msra.mxu0 0.0
        %1300 = vmatprep.subr.mxu0 0.0
        %1301 = vmatpush1.msra.mxu0 0.0
        %1302 = vmatprep.subr.mxu0 0.0
        %1303 = vmatpush1.msra.mxu0 0.0
        %1304 = vmatprep.subr.mxu0 0.0
        %1305 = vmatpush1.msra.mxu0 0.0
        %1306 = vmatprep.subr.mxu0 0.0
        %1307 = vmatpush1.msra.mxu0 0.0
        %1308 = vmatprep.subr.mxu0 0.0
        %1309 = vmatpush1.msra.mxu0 0.0
        %1310 = vmatprep.subr.mxu0 0.0
        %1311 = vmatpush1.msra.mxu0 0.0
        %1312 = vmatprep.subr.mxu0 0.0
        %1313 = vmatpush1.msra.mxu0 0.0
        %1314 = vmatprep.subr.mxu0 0.0
        %1315 = vmatpush1.msra.mxu0 0.0
        %1316 = vmatprep.subr.mxu0 0.0
        %1317 = vmatpush1.msra.mxu0 0.0
        %1318 = vmatprep.subr.mxu0 0.0
        %1319 = vmatpush1.msra.mxu0 0.0
        %1320 = vmatprep.subr.mxu0 0.0
        %1321 = vmatpush1.msra.mxu0 0.0
        %1322 = vmatprep.subr.mxu0 0.0
        %1323 = vmatpush1.msra.mxu0 0.0
        %1324 = vmatprep.subr.mxu0 0.0
        %1325 = vmatpush1.msra.mxu0 0.0
        %1326 = vmatprep.subr.mxu0 0.0
        %1327 = vmatpush1.msra.mxu0 0.0
        %1328 = vmatprep.subr.mxu0 0.0
        %1329 = vmatpush1.msra.mxu0 0.0
        %1330 = vmatprep.subr.mxu0 0.0
        %1331 = vmatpush1.msra.mxu0 0.0
        %1332 = vmatprep.subr.mxu0 0.0
        %1333 = vmatpush1.msra.mxu0 0.0
        %1334 = vmatprep.subr.mxu0 0.0
        %1335 = vmatpush1.msra.mxu0 0.0
        %1336 = vmatprep.subr.mxu0 0.0
        %1337 = vmatpush1.msra.mxu0 0.0
        %1338 = vmatprep.subr.mxu0 0.0
        %1339 = vmatpush1.msra.mxu0 0.0
        %1340 = vmatprep.subr.mxu0 0.0
        %1341 = vmatpush1.msra.mxu0 0.0
        %1342 = vmatprep.subr.mxu0 0.0
        %1343 = vmatpush1.msra.mxu0 0.0
        %1344 = vmatprep.subr.mxu0 0.0
        %1345 = vmatpush1.msra.mxu0 0.0
        %1346 = vmatprep.subr.mxu0 0.0
        %1347 = vmatpush1.msra.mxu0 0.0
        %1348 = vmatprep.subr.mxu0 0.0
        %1349 = vmatpush1.msra.mxu0 0.0
        %1350 = vmatprep.subr.mxu0 0.0
        %1351 = vmatpush1.msra.mxu0 0.0
        %1352 = vmatprep.mubr.f32.mxu0 0.0
        %1353 = vmatmul.mubr.f32.gmra.mrb[0].mxu0 %v1286
        %v1354 = vpop.f32.mrb[0].mxu0
        %v1355 = vadd.f32 0.0, %v1354
        %v1356 = vpop.f32.mrb[0].mxu0
        %1357 = vdwg.mxu0
        %v1358 = vadd.f32 %v1284, %v1355
        %1359 = vst.msk [vmem:[#allocation2] sm:$0xff] %vm1115, %v1358
        %1360 = vrot.lane.b32.xlu0 %v706, 112
        %v1361 = vpop.permute.xlu0 %1360
        %1362 = vrot.lane.b32.xlu0 %v791, 112
        %v1363 = vpop.permute.xlu0 %1362
        %v1364 = vsel %vm878, %v1361, 0
        %v1366 = vsel %vm878, %v1363, 0
        %1368 = vmatprep.subr.mxu0 0.0
        %1369 = vmatpush1.xpose.msra.mxu0 %v1366
        %1370 = vmatprep.subr.mxu0 0.0
        %1371 = vmatpush1.xpose.msra.mxu0 0.0
        %1372 = vmatprep.subr.mxu0 0.0
        %1373 = vmatpush1.xpose.msra.mxu0 0.0
        %1374 = vmatprep.subr.mxu0 0.0
        %1375 = vmatpush1.xpose.msra.mxu0 0.0
        %1376 = vmatprep.subr.mxu0 0.0
        %1377 = vmatpush1.xpose.msra.mxu0 0.0
        %1378 = vmatprep.subr.mxu0 0.0
        %1379 = vmatpush1.xpose.msra.mxu0 0.0
        %1380 = vmatprep.subr.mxu0 0.0
        %1381 = vmatpush1.xpose.msra.mxu0 0.0
        %1382 = vmatprep.subr.mxu0 0.0
        %1383 = vmatpush1.xpose.msra.mxu0 0.0
        %1384 = vmatprep.subr.mxu0 0.0
        %1385 = vmatpush1.xpose.msra.mxu0 0.0
        %1386 = vmatprep.subr.mxu0 0.0
        %1387 = vmatpush1.xpose.msra.mxu0 0.0
        %1388 = vmatprep.subr.mxu0 0.0
        %1389 = vmatpush1.xpose.msra.mxu0 0.0
        %1390 = vmatprep.subr.mxu0 0.0
        %1391 = vmatpush1.xpose.msra.mxu0 0.0
        %1392 = vmatprep.subr.mxu0 0.0
        %1393 = vmatpush1.xpose.msra.mxu0 0.0
        %1394 = vmatprep.subr.mxu0 0.0
        %1395 = vmatpush1.xpose.msra.mxu0 0.0
        %1396 = vmatprep.subr.mxu0 0.0
        %1397 = vmatpush1.xpose.msra.mxu0 0.0
        %1398 = vmatprep.subr.mxu0 0.0
        %1399 = vmatpush1.xpose.msra.mxu0 0.0
        %1400 = vmatprep.subr.mxu0 0.0
        %1401 = vmatpush1.xpose.msra.mxu0 0.0
        %1402 = vmatprep.subr.mxu0 0.0
        %1403 = vmatpush1.xpose.msra.mxu0 0.0
        %1404 = vmatprep.subr.mxu0 0.0
        %1405 = vmatpush1.xpose.msra.mxu0 0.0
        %1406 = vmatprep.subr.mxu0 0.0
        %1407 = vmatpush1.xpose.msra.mxu0 0.0
        %1408 = vmatprep.subr.mxu0 0.0
        %1409 = vmatpush1.xpose.msra.mxu0 0.0
        %1410 = vmatprep.subr.mxu0 0.0
        %1411 = vmatpush1.xpose.msra.mxu0 0.0
        %1412 = vmatprep.subr.mxu0 0.0
        %1413 = vmatpush1.xpose.msra.mxu0 0.0
        %1414 = vmatprep.subr.mxu0 0.0
        %1415 = vmatpush1.xpose.msra.mxu0 0.0
        %1416 = vmatprep.subr.mxu0 0.0
        %1417 = vmatpush1.xpose.msra.mxu0 0.0
        %1418 = vmatprep.subr.mxu0 0.0
        %1419 = vmatpush1.xpose.msra.mxu0 0.0
        %1420 = vmatprep.subr.mxu0 0.0
        %1421 = vmatpush1.xpose.msra.mxu0 0.0
        %1422 = vmatprep.subr.mxu0 0.0
        %1423 = vmatpush1.xpose.msra.mxu0 0.0
        %1424 = vmatprep.subr.mxu0 0.0
        %1425 = vmatpush1.xpose.msra.mxu0 0.0
        %1426 = vmatprep.subr.mxu0 0.0
        %1427 = vmatpush1.xpose.msra.mxu0 0.0
        %1428 = vmatprep.subr.mxu0 0.0
        %1429 = vmatpush1.xpose.msra.mxu0 0.0
        %1430 = vmatprep.subr.mxu0 0.0
        %1431 = vmatpush1.xpose.msra.mxu0 0.0
        %1432 = vmatprep.mubr.f32.mxu0 0.0
        %1433 = vmatmul.mubr.f32.gmra.mrb[0].mxu0 %v1364
        %v1434 = vpop.f32.mrb[0].mxu0
        %v1435 = vadd.f32 0.0, %v1434
        %v1436 = vpop.f32.mrb[0].mxu0
        %1437 = vdwg.mxu0
        %v1438 = vsel %vm878, %v1435, -inf
        %1439 = vmax.xlane.f32.xlu0 %v1438
        %v1440 = vpop.xlane.xlu0 %1439
        %v1441 = vsub.f32 %v1435, %v1440
        %v1442 = vmul.f32 %v1441, 1.442695
        %v1443 = vpow.pop %v1442
        %v1444 = vsel %vm878, %v1443, 0.0
        %1445 = vadd.xlane.f32.xlu0 %v1444
        %v1446 = vpop.xlane.xlu0 %1445
        %v1447 = vrcp.pop %v1446
        %v1448 = vmul.f32 %v1443, %v1447
        %1449 = vrot.lane.b32.xlu0 %v875, 112
        %v1450 = vpop.permute.xlu0 %1449
        %v1453 = vsel %vm878, %v1448, 0
        %1455 = vmatprep.subr.mxu0 0.0
        %1456 = vmatpush1.msra.mxu0 %v1450
        %1457 = vmatprep.subr.mxu0 0.0
        %1458 = vmatpush1.msra.mxu0 0.0
        %1459 = vmatprep.subr.mxu0 0.0
        %1460 = vmatpush1.msra.mxu0 0.0
        %1461 = vmatprep.subr.mxu0 0.0
        %1462 = vmatpush1.msra.mxu0 0.0
        %1463 = vmatprep.subr.mxu0 0.0
        %1464 = vmatpush1.msra.mxu0 0.0
        %1465 = vmatprep.subr.mxu0 0.0
        %1466 = vmatpush1.msra.mxu0 0.0
        %1467 = vmatprep.subr.mxu0 0.0
        %1468 = vmatpush1.msra.mxu0 0.0
        %1469 = vmatprep.subr.mxu0 0.0
        %1470 = vmatpush1.msra.mxu0 0.0
        %1471 = vmatprep.subr.mxu0 0.0
        %1472 = vmatpush1.msra.mxu0 0.0
        %1473 = vmatprep.subr.mxu0 0.0
        %1474 = vmatpush1.msra.mxu0 0.0
        %1475 = vmatprep.subr.mxu0 0.0
        %1476 = vmatpush1.msra.mxu0 0.0
        %1477 = vmatprep.subr.mxu0 0.0
        %1478 = vmatpush1.msra.mxu0 0.0
        %1479 = vmatprep.subr.mxu0 0.0
        %1480 = vmatpush1.msra.mxu0 0.0
        %1481 = vmatprep.subr.mxu0 0.0
        %1482 = vmatpush1.msra.mxu0 0.0
        %1483 = vmatprep.subr.mxu0 0.0
        %1484 = vmatpush1.msra.mxu0 0.0
        %1485 = vmatprep.subr.mxu0 0.0
        %1486 = vmatpush1.msra.mxu0 0.0
        %1487 = vmatprep.subr.mxu0 0.0
        %1488 = vmatpush1.msra.mxu0 0.0
        %1489 = vmatprep.subr.mxu0 0.0
        %1490 = vmatpush1.msra.mxu0 0.0
        %1491 = vmatprep.subr.mxu0 0.0
        %1492 = vmatpush1.msra.mxu0 0.0
        %1493 = vmatprep.subr.mxu0 0.0
        %1494 = vmatpush1.msra.mxu0 0.0
        %1495 = vmatprep.subr.mxu0 0.0
        %1496 = vmatpush1.msra.mxu0 0.0
        %1497 = vmatprep.subr.mxu0 0.0
        %1498 = vmatpush1.msra.mxu0 0.0
        %1499 = vmatprep.subr.mxu0 0.0
        %1500 = vmatpush1.msra.mxu0 0.0
        %1501 = vmatprep.subr.mxu0 0.0
        %1502 = vmatpush1.msra.mxu0 0.0
        %1503 = vmatprep.subr.mxu0 0.0
        %1504 = vmatpush1.msra.mxu0 0.0
        %1505 = vmatprep.subr.mxu0 0.0
        %1506 = vmatpush1.msra.mxu0 0.0
        %1507 = vmatprep.subr.mxu0 0.0
        %1508 = vmatpush1.msra.mxu0 0.0
        %1509 = vmatprep.subr.mxu0 0.0
        %1510 = vmatpush1.msra.mxu0 0.0
        %1511 = vmatprep.subr.mxu0 0.0
        %1512 = vmatpush1.msra.mxu0 0.0
        %1513 = vmatprep.subr.mxu0 0.0
        %1514 = vmatpush1.msra.mxu0 0.0
        %1515 = vmatprep.subr.mxu0 0.0
        %1516 = vmatpush1.msra.mxu0 0.0
        %1517 = vmatprep.subr.mxu0 0.0
        %1518 = vmatpush1.msra.mxu0 0.0
        %1519 = vmatprep.mubr.f32.mxu0 0.0
        %1520 = vmatmul.mubr.f32.gmra.mrb[0].mxu0 %v1453
        %v1521 = vpop.f32.mrb[0].mxu0
        %v1522 = vadd.f32 0.0, %v1521
        %v1523 = vpop.f32.mrb[0].mxu0
        %1524 = vdwg.mxu0
        %v1525 = vld [vmem:[%s617 + $0x10] sm:$0xff]
        %v1526 = vld [vmem:[#allocation2] sm:$0xff]
        %v1528 = vsel %vm878, %v1522, 0
        %1530 = vmatprep.subr.mxu0 0.0
        %1531 = vmatpush1.msra.mxu0 %v1525
        %1532 = vmatprep.subr.mxu0 0.0
        %1533 = vmatpush1.msra.mxu0 0.0
        %1534 = vmatprep.subr.mxu0 0.0
        %1535 = vmatpush1.msra.mxu0 0.0
        %1536 = vmatprep.subr.mxu0 0.0
        %1537 = vmatpush1.msra.mxu0 0.0
        %1538 = vmatprep.subr.mxu0 0.0
        %1539 = vmatpush1.msra.mxu0 0.0
        %1540 = vmatprep.subr.mxu0 0.0
        %1541 = vmatpush1.msra.mxu0 0.0
        %1542 = vmatprep.subr.mxu0 0.0
        %1543 = vmatpush1.msra.mxu0 0.0
        %1544 = vmatprep.subr.mxu0 0.0
        %1545 = vmatpush1.msra.mxu0 0.0
        %1546 = vmatprep.subr.mxu0 0.0
        %1547 = vmatpush1.msra.mxu0 0.0
        %1548 = vmatprep.subr.mxu0 0.0
        %1549 = vmatpush1.msra.mxu0 0.0
        %1550 = vmatprep.subr.mxu0 0.0
        %1551 = vmatpush1.msra.mxu0 0.0
        %1552 = vmatprep.subr.mxu0 0.0
        %1553 = vmatpush1.msra.mxu0 0.0
        %1554 = vmatprep.subr.mxu0 0.0
        %1555 = vmatpush1.msra.mxu0 0.0
        %1556 = vmatprep.subr.mxu0 0.0
        %1557 = vmatpush1.msra.mxu0 0.0
        %1558 = vmatprep.subr.mxu0 0.0
        %1559 = vmatpush1.msra.mxu0 0.0
        %1560 = vmatprep.subr.mxu0 0.0
        %1561 = vmatpush1.msra.mxu0 0.0
        %1562 = vmatprep.subr.mxu0 0.0
        %1563 = vmatpush1.msra.mxu0 0.0
        %1564 = vmatprep.subr.mxu0 0.0
        %1565 = vmatpush1.msra.mxu0 0.0
        %1566 = vmatprep.subr.mxu0 0.0
        %1567 = vmatpush1.msra.mxu0 0.0
        %1568 = vmatprep.subr.mxu0 0.0
        %1569 = vmatpush1.msra.mxu0 0.0
        %1570 = vmatprep.subr.mxu0 0.0
        %1571 = vmatpush1.msra.mxu0 0.0
        %1572 = vmatprep.subr.mxu0 0.0
        %1573 = vmatpush1.msra.mxu0 0.0
        %1574 = vmatprep.subr.mxu0 0.0
        %1575 = vmatpush1.msra.mxu0 0.0
        %1576 = vmatprep.subr.mxu0 0.0
        %1577 = vmatpush1.msra.mxu0 0.0
        %1578 = vmatprep.subr.mxu0 0.0
        %1579 = vmatpush1.msra.mxu0 0.0
        %1580 = vmatprep.subr.mxu0 0.0
        %1581 = vmatpush1.msra.mxu0 0.0
        %1582 = vmatprep.subr.mxu0 0.0
        %1583 = vmatpush1.msra.mxu0 0.0
        %1584 = vmatprep.subr.mxu0 0.0
        %1585 = vmatpush1.msra.mxu0 0.0
        %1586 = vmatprep.subr.mxu0 0.0
        %1587 = vmatpush1.msra.mxu0 0.0
        %1588 = vmatprep.subr.mxu0 0.0
        %1589 = vmatpush1.msra.mxu0 0.0
        %1590 = vmatprep.subr.mxu0 0.0
        %1591 = vmatpush1.msra.mxu0 0.0
        %1592 = vmatprep.subr.mxu0 0.0
        %1593 = vmatpush1.msra.mxu0 0.0
        %1594 = vmatprep.mubr.f32.mxu0 0.0
        %1595 = vmatmul.mubr.f32.gmra.mrb[0].mxu0 %v1528
        %v1596 = vpop.f32.mrb[0].mxu0
        %v1597 = vadd.f32 0.0, %v1596
        %v1598 = vpop.f32.mrb[0].mxu0
        %1599 = vdwg.mxu0
        %v1600 = vadd.f32 %v1526, %v1597
        %1601 = vst.msk [vmem:[#allocation2] sm:$0xff] %vm1115, %v1600
        %1602 = vrot.lane.b32.xlu0 %v706, 104
        %v1603 = vpop.permute.xlu0 %1602
        %1604 = vrot.lane.b32.xlu0 %v791, 104
        %v1605 = vpop.permute.xlu0 %1604
        %v1606 = vsel %vm878, %v1603, 0
        %v1608 = vsel %vm878, %v1605, 0
        %1610 = vmatprep.subr.mxu0 0.0
        %1611 = vmatpush1.xpose.msra.mxu0 %v1608
        %1612 = vmatprep.subr.mxu0 0.0
        %1613 = vmatpush1.xpose.msra.mxu0 0.0
        %1614 = vmatprep.subr.mxu0 0.0
        %1615 = vmatpush1.xpose.msra.mxu0 0.0
        %1616 = vmatprep.subr.mxu0 0.0
        %1617 = vmatpush1.xpose.msra.mxu0 0.0
        %1618 = vmatprep.subr.mxu0 0.0
        %1619 = vmatpush1.xpose.msra.mxu0 0.0
        %1620 = vmatprep.subr.mxu0 0.0
        %1621 = vmatpush1.xpose.msra.mxu0 0.0
        %1622 = vmatprep.subr.mxu0 0.0
        %1623 = vmatpush1.xpose.msra.mxu0 0.0
        %1624 = vmatprep.subr.mxu0 0.0
        %1625 = vmatpush1.xpose.msra.mxu0 0.0
        %1626 = vmatprep.subr.mxu0 0.0
        %1627 = vmatpush1.xpose.msra.mxu0 0.0
        %1628 = vmatprep.subr.mxu0 0.0
        %1629 = vmatpush1.xpose.msra.mxu0 0.0
        %1630 = vmatprep.subr.mxu0 0.0
        %1631 = vmatpush1.xpose.msra.mxu0 0.0
        %1632 = vmatprep.subr.mxu0 0.0
        %1633 = vmatpush1.xpose.msra.mxu0 0.0
        %1634 = vmatprep.subr.mxu0 0.0
        %1635 = vmatpush1.xpose.msra.mxu0 0.0
        %1636 = vmatprep.subr.mxu0 0.0
        %1637 = vmatpush1.xpose.msra.mxu0 0.0
        %1638 = vmatprep.subr.mxu0 0.0
        %1639 = vmatpush1.xpose.msra.mxu0 0.0
        %1640 = vmatprep.subr.mxu0 0.0
        %1641 = vmatpush1.xpose.msra.mxu0 0.0
        %1642 = vmatprep.subr.mxu0 0.0
        %1643 = vmatpush1.xpose.msra.mxu0 0.0
        %1644 = vmatprep.subr.mxu0 0.0
        %1645 = vmatpush1.xpose.msra.mxu0 0.0
        %1646 = vmatprep.subr.mxu0 0.0
        %1647 = vmatpush1.xpose.msra.mxu0 0.0
        %1648 = vmatprep.subr.mxu0 0.0
        %1649 = vmatpush1.xpose.msra.mxu0 0.0
        %1650 = vmatprep.subr.mxu0 0.0
        %1651 = vmatpush1.xpose.msra.mxu0 0.0
        %1652 = vmatprep.subr.mxu0 0.0
        %1653 = vmatpush1.xpose.msra.mxu0 0.0
        %1654 = vmatprep.subr.mxu0 0.0
        %1655 = vmatpush1.xpose.msra.mxu0 0.0
        %1656 = vmatprep.subr.mxu0 0.0
        %1657 = vmatpush1.xpose.msra.mxu0 0.0
        %1658 = vmatprep.subr.mxu0 0.0
        %1659 = vmatpush1.xpose.msra.mxu0 0.0
        %1660 = vmatprep.subr.mxu0 0.0
        %1661 = vmatpush1.xpose.msra.mxu0 0.0
        %1662 = vmatprep.subr.mxu0 0.0
        %1663 = vmatpush1.xpose.msra.mxu0 0.0
        %1664 = vmatprep.subr.mxu0 0.0
        %1665 = vmatpush1.xpose.msra.mxu0 0.0
        %1666 = vmatprep.subr.mxu0 0.0
        %1667 = vmatpush1.xpose.msra.mxu0 0.0
        %1668 = vmatprep.subr.mxu0 0.0
        %1669 = vmatpush1.xpose.msra.mxu0 0.0
        %1670 = vmatprep.subr.mxu0 0.0
        %1671 = vmatpush1.xpose.msra.mxu0 0.0
        %1672 = vmatprep.subr.mxu0 0.0
        %1673 = vmatpush1.xpose.msra.mxu0 0.0
        %1674 = vmatprep.mubr.f32.mxu0 0.0
        %1675 = vmatmul.mubr.f32.gmra.mrb[0].mxu0 %v1606
        %v1676 = vpop.f32.mrb[0].mxu0
        %v1677 = vadd.f32 0.0, %v1676
        %v1678 = vpop.f32.mrb[0].mxu0
        %1679 = vdwg.mxu0
        %v1680 = vsel %vm878, %v1677, -inf
        %1681 = vmax.xlane.f32.xlu0 %v1680
        %v1682 = vpop.xlane.xlu0 %1681
        %v1683 = vsub.f32 %v1677, %v1682
        %v1684 = vmul.f32 %v1683, 1.442695
        %v1685 = vpow.pop %v1684
        %v1686 = vsel %vm878, %v1685, 0.0
        %1687 = vadd.xlane.f32.xlu0 %v1686
        %v1688 = vpop.xlane.xlu0 %1687
        %v1689 = vrcp.pop %v1688
        %v1690 = vmul.f32 %v1685, %v1689
        %1691 = vrot.lane.b32.xlu0 %v875, 104
        %v1692 = vpop.permute.xlu0 %1691
        %v1695 = vsel %vm878, %v1690, 0
        %1697 = vmatprep.subr.mxu0 0.0
        %1698 = vmatpush1.msra.mxu0 %v1692
        %1699 = vmatprep.subr.mxu0 0.0
        %1700 = vmatpush1.msra.mxu0 0.0
        %1701 = vmatprep.subr.mxu0 0.0
        %1702 = vmatpush1.msra.mxu0 0.0
        %1703 = vmatprep.subr.mxu0 0.0
        %1704 = vmatpush1.msra.mxu0 0.0
        %1705 = vmatprep.subr.mxu0 0.0
        %1706 = vmatpush1.msra.mxu0 0.0
        %1707 = vmatprep.subr.mxu0 0.0
        %1708 = vmatpush1.msra.mxu0 0.0
        %1709 = vmatprep.subr.mxu0 0.0
        %1710 = vmatpush1.msra.mxu0 0.0
        %1711 = vmatprep.subr.mxu0 0.0
        %1712 = vmatpush1.msra.mxu0 0.0
        %1713 = vmatprep.subr.mxu0 0.0
        %1714 = vmatpush1.msra.mxu0 0.0
        %1715 = vmatprep.subr.mxu0 0.0
        %1716 = vmatpush1.msra.mxu0 0.0
        %1717 = vmatprep.subr.mxu0 0.0
        %1718 = vmatpush1.msra.mxu0 0.0
        %1719 = vmatprep.subr.mxu0 0.0
        %1720 = vmatpush1.msra.mxu0 0.0
        %1721 = vmatprep.subr.mxu0 0.0
        %1722 = vmatpush1.msra.mxu0 0.0
        %1723 = vmatprep.subr.mxu0 0.0
        %1724 = vmatpush1.msra.mxu0 0.0
        %1725 = vmatprep.subr.mxu0 0.0
        %1726 = vmatpush1.msra.mxu0 0.0
        %1727 = vmatprep.subr.mxu0 0.0
        %1728 = vmatpush1.msra.mxu0 0.0
        %1729 = vmatprep.subr.mxu0 0.0
        %1730 = vmatpush1.msra.mxu0 0.0
        %1731 = vmatprep.subr.mxu0 0.0
        %1732 = vmatpush1.msra.mxu0 0.0
        %1733 = vmatprep.subr.mxu0 0.0
        %1734 = vmatpush1.msra.mxu0 0.0
        %1735 = vmatprep.subr.mxu0 0.0
        %1736 = vmatpush1.msra.mxu0 0.0
        %1737 = vmatprep.subr.mxu0 0.0
        %1738 = vmatpush1.msra.mxu0 0.0
        %1739 = vmatprep.subr.mxu0 0.0
        %1740 = vmatpush1.msra.mxu0 0.0
        %1741 = vmatprep.subr.mxu0 0.0
        %1742 = vmatpush1.msra.mxu0 0.0
        %1743 = vmatprep.subr.mxu0 0.0
        %1744 = vmatpush1.msra.mxu0 0.0
        %1745 = vmatprep.subr.mxu0 0.0
        %1746 = vmatpush1.msra.mxu0 0.0
        %1747 = vmatprep.subr.mxu0 0.0
        %1748 = vmatpush1.msra.mxu0 0.0
        %1749 = vmatprep.subr.mxu0 0.0
        %1750 = vmatpush1.msra.mxu0 0.0
        %1751 = vmatprep.subr.mxu0 0.0
        %1752 = vmatpush1.msra.mxu0 0.0
        %1753 = vmatprep.subr.mxu0 0.0
        %1754 = vmatpush1.msra.mxu0 0.0
        %1755 = vmatprep.subr.mxu0 0.0
        %1756 = vmatpush1.msra.mxu0 0.0
        %1757 = vmatprep.subr.mxu0 0.0
        %1758 = vmatpush1.msra.mxu0 0.0
        %1759 = vmatprep.subr.mxu0 0.0
        %1760 = vmatpush1.msra.mxu0 0.0
        %1761 = vmatprep.mubr.f32.mxu0 0.0
        %1762 = vmatmul.mubr.f32.gmra.mrb[0].mxu0 %v1695
        %v1763 = vpop.f32.mrb[0].mxu0
        %v1764 = vadd.f32 0.0, %v1763
        %v1765 = vpop.f32.mrb[0].mxu0
        %1766 = vdwg.mxu0
        %v1767 = vld [vmem:[%s617 + $0x18] sm:$0xff]
        %v1768 = vld [vmem:[#allocation2] sm:$0xff]
        %v1770 = vsel %vm878, %v1764, 0
        %1772 = vmatprep.subr.mxu0 0.0
        %1773 = vmatpush1.msra.mxu0 %v1767
        %1774 = vmatprep.subr.mxu0 0.0
        %1775 = vmatpush1.msra.mxu0 0.0
        %1776 = vmatprep.subr.mxu0 0.0
        %1777 = vmatpush1.msra.mxu0 0.0
        %1778 = vmatprep.subr.mxu0 0.0
        %1779 = vmatpush1.msra.mxu0 0.0
        %1780 = vmatprep.subr.mxu0 0.0
        %1781 = vmatpush1.msra.mxu0 0.0
        %1782 = vmatprep.subr.mxu0 0.0
        %1783 = vmatpush1.msra.mxu0 0.0
        %1784 = vmatprep.subr.mxu0 0.0
        %1785 = vmatpush1.msra.mxu0 0.0
        %1786 = vmatprep.subr.mxu0 0.0
        %1787 = vmatpush1.msra.mxu0 0.0
        %1788 = vmatprep.subr.mxu0 0.0
        %1789 = vmatpush1.msra.mxu0 0.0
        %1790 = vmatprep.subr.mxu0 0.0
        %1791 = vmatpush1.msra.mxu0 0.0
        %1792 = vmatprep.subr.mxu0 0.0
        %1793 = vmatpush1.msra.mxu0 0.0
        %1794 = vmatprep.subr.mxu0 0.0
        %1795 = vmatpush1.msra.mxu0 0.0
        %1796 = vmatprep.subr.mxu0 0.0
        %1797 = vmatpush1.msra.mxu0 0.0
        %1798 = vmatprep.subr.mxu0 0.0
        %1799 = vmatpush1.msra.mxu0 0.0
        %1800 = vmatprep.subr.mxu0 0.0
        %1801 = vmatpush1.msra.mxu0 0.0
        %1802 = vmatprep.subr.mxu0 0.0
        %1803 = vmatpush1.msra.mxu0 0.0
        %1804 = vmatprep.subr.mxu0 0.0
        %1805 = vmatpush1.msra.mxu0 0.0
        %1806 = vmatprep.subr.mxu0 0.0
        %1807 = vmatpush1.msra.mxu0 0.0
        %1808 = vmatprep.subr.mxu0 0.0
        %1809 = vmatpush1.msra.mxu0 0.0
        %1810 = vmatprep.subr.mxu0 0.0
        %1811 = vmatpush1.msra.mxu0 0.0
        %1812 = vmatprep.subr.mxu0 0.0
        %1813 = vmatpush1.msra.mxu0 0.0
        %1814 = vmatprep.subr.mxu0 0.0
        %1815 = vmatpush1.msra.mxu0 0.0
        %1816 = vmatprep.subr.mxu0 0.0
        %1817 = vmatpush1.msra.mxu0 0.0
        %1818 = vmatprep.subr.mxu0 0.0
        %1819 = vmatpush1.msra.mxu0 0.0
        %1820 = vmatprep.subr.mxu0 0.0
        %1821 = vmatpush1.msra.mxu0 0.0
        %1822 = vmatprep.subr.mxu0 0.0
        %1823 = vmatpush1.msra.mxu0 0.0
        %1824 = vmatprep.subr.mxu0 0.0
        %1825 = vmatpush1.msra.mxu0 0.0
        %1826 = vmatprep.subr.mxu0 0.0
        %1827 = vmatpush1.msra.mxu0 0.0
        %1828 = vmatprep.subr.mxu0 0.0
        %1829 = vmatpush1.msra.mxu0 0.0
        %1830 = vmatprep.subr.mxu0 0.0
        %1831 = vmatpush1.msra.mxu0 0.0
        %1832 = vmatprep.subr.mxu0 0.0
        %1833 = vmatpush1.msra.mxu0 0.0
        %1834 = vmatprep.subr.mxu0 0.0
        %1835 = vmatpush1.msra.mxu0 0.0
        %1836 = vmatprep.mubr.f32.mxu0 0.0
        %1837 = vmatmul.mubr.f32.gmra.mrb[0].mxu0 %v1770
        %v1838 = vpop.f32.mrb[0].mxu0
        %v1839 = vadd.f32 0.0, %v1838
        %v1840 = vpop.f32.mrb[0].mxu0
        %1841 = vdwg.mxu0
        %v1842 = vadd.f32 %v1768, %v1839
        %1843 = vst.msk [vmem:[#allocation2] sm:$0xff] %vm1115, %v1842
        // Predicated region
        $region97: #{tpu_custom_call.1} parent=63 // pred_check
          %p1844 = pneg %p619
        $region98: #{tpu_custom_call.1} parent=63 // pred_check_branch
          %1846 = sbr.rel (%p1844) target = $region100
        $region99: #{tpu_custom_call.1} parent=63 // pred_region
          %v1847 = vld [vmem:[#allocation2] sm:$0xff]
          %v1848 = vld [vmem:[%s10] sm:$0x1]
          %v1850 = vlaneseq
          %v1851 = vshrl.u32 %v1850, 7
          %v1852 = vsub.s32 0, %v1851
          %v1853 = vrot.slane %v1848, %v1852
          %v1855 = vadd.f32 %v1847, %v1853
          %1856 = vst.msk [vmem:[%s606] sm:$0xff] %vm1115, %v1855
        $region100: #{tpu_custom_call.1} parent=63 // pred_fallthru
          _
        %s1857 = sand.u32 %s334, 1
        %s1858 = scalar_lea.sflag [#allocation5], %s1857
        %s1859 = sand.u32 %s334, 1
        %s1860 = smul.addr %s1859, 8
        %s1861 = scalar_lea.vmem [#allocation15], %s1860
        // Predicated region
        $region101: #{tpu_custom_call.1} parent=63 // pred_check
          %p1862 = pneg %p344
        $region102: #{tpu_custom_call.1} parent=63 // pred_check_branch
          %1864 = sbr.rel (%p1862) target = $region104
        $region103: #{tpu_custom_call.1} parent=63 // pred_region
          %s1866 = ssub.s32 128, 128
          %1867 = vsyncadd %s1858, %s1866
          %s1868 = smul.addr %s37, 128
          %s1869 = scalar_lea.hbm %s11, %s1868
          %s1871 = sshll.u32 %s1861, 4
          %s1872 = int_to_ptr.vmem [resolvable:$true] %s1871
          %1874 = dma.vmem_to_hbm [thread:$0]  %s1872, 128, %s1869, %s1858
        $region104: #{tpu_custom_call.1} parent=63 // pred_fallthru
          _
      $region64: #{tpu_custom_call.1} parent=5 // pred_fallthru
        _
      %p1875 = scmp.le.s32.totalorder 2, %s28
      // Predicated region
      $region105: #{tpu_custom_call.1} parent=5 // pred_check
        %p1876 = pneg %p1875
      $region106: #{tpu_custom_call.1} parent=5 // pred_check_branch
        %1878 = sbr.rel (%p1876) target = $region108
      $region107: #{tpu_custom_call.1} parent=5 // pred_region
        %s1879 = ssub.s32 %s28, 2
        // Predicated region
        $region109: #{tpu_custom_call.1} parent=107 // pred_check
          %p1880 = pneg %p350
        $region110: #{tpu_custom_call.1} parent=107 // pred_check_branch
          %1882 = sbr.rel (%p1880) target = $region112
        $region111: #{tpu_custom_call.1} parent=107 // pred_region
          %s1883 = sand.u32 %s335, 1
          %s1884 = scalar_lea.sflag [#allocation5], %s1883
          %s1885 = sand.u32 %s335, 1
          %s1886 = smul.addr %s1885, 8
          %s1887 = scalar_lea.vmem [#allocation15], %s1886
          %1888 = dma.done %s1884, 128
        $region112: #{tpu_custom_call.1} parent=107 // pred_fallthru
          _
      $region108: #{tpu_custom_call.1} parent=5 // pred_fallthru
        _
    $region6: #{tpu_custom_call.1} parent=1 // loop_footer
      %s32 = sadd.s32 1, %s28
    $region7: #{tpu_custom_call.1} parent=1 // loop_footer_branch
      %27 = sbr.rel target = $region3
    $region8: #{tpu_custom_call.1} parent=1 // loop_exit
      _
    %1889 = vsyncpa [#allocation4], 1
    %s1890 = scalar_lea.sflag [#allocation4], 1
    %1891 = vsyncpa %s1890, 1
    %1892 = vsyncpa [#allocation7], 1
    %s1893 = scalar_lea.sflag [#allocation7], 1
    %1894 = vsyncpa %s1893, 1
    %1895 = vsyncpa [#allocation10], 1
    %1896 = vsyncpa [#allocation13], 1
    %1897 = vsyncpa [#allocation5], 1
    %s1898 = scalar_lea.sflag [#allocation5], 1
    %1899 = vsyncpa %s1898, 1

</llo_original>
